<compile_context>
chip_gen: v6e
topology: v6e:2x2x1
jax: 0.10.0
libtpu: 0.0.40
codegen_flags: <defaults>
</compile_context>

<pallas_src>
import functools
import math

import jax
import jax.numpy as jnp
from jax.experimental import pallas as pl
from jax.experimental.pallas import tpu as pltpu

EPS = 1e-5  # torch.nn.LayerNorm default eps


def _layernorm(x, gamma, beta):
    # x: (M, D) f32, gamma/beta: (1, D) f32
    mean = jnp.mean(x, axis=-1, keepdims=True)
    var = jnp.mean((x - mean) ** 2, axis=-1, keepdims=True)
    return (x - mean) * jax.lax.rsqrt(var + EPS) * gamma + beta


def _default_vmem_limit():
    # ~3/4 of physical VMEM: ~96 MiB on v5e/v6e (128 MiB), ~48 MiB on v7x (64 MiB).
    try:
        cap = pltpu.get_tpu_info().vmem_capacity_bytes
        return int(min(cap * 3 // 4, 100 * 1024 * 1024))
    except Exception:
        return 48 * 1024 * 1024


# ---------------------------------------------------------------------------
# Fused transformer kernel: all layers + final LayerNorm in one pallas_call.
# Grid = (batch_blocks, depth); residual stream stays resident in VMEM scratch.
# ---------------------------------------------------------------------------
def _transformer_kernel(x_ref, ag_ref, ab_ref, wqkv_ref, wo_ref, bo_ref,
                        fg_ref, fb_ref, w1_ref, b1_ref, w2_ref, b2_ref,
                        gn_ref, bn_ref, o_ref, act_ref, oslab_ref,
                        *, heads, dim_head, seq_len, batch_block,
                        compute_dtype):
    l = pl.program_id(1)
    n_layers = pl.num_programs(1)
    inner = heads * dim_head
    N = seq_len

    # Layer 0: load this batch block's activations into the resident f32 stream.
    @pl.when(l == 0)
    def _():
        act_ref[...] = x_ref[0].astype(jnp.float32)

    x = act_ref[...]                                        # (Bb*N, D) float32

    # ---------------- Attention sub-block (pre-LN MHSA) ----------------
    xn = _layernorm(x, ag_ref[0], ab_ref[0])
    xb = xn.astype(compute_dtype)
    # Single fused QKV matmul over all Bb*N rows (softmax scale pre-folded
    # into the Q columns of the weight at trace time).
    qkv = jnp.dot(xb, wqkv_ref[0], preferred_element_type=jnp.float32)
    qkv_c = qkv.astype(compute_dtype)                       # (Bb*N, 3*inner)

    # Per-(sequence, head) attention; each head writes its output into the
    # (Bb*N, inner) slab so the W_o projection is a single deep matmul.
    for b in range(batch_block):                            # static unroll
        r0 = b * N
        for h in range(heads):                              # static unroll
            lo = h * dim_head
            q_h = qkv_c[r0:r0 + N, lo:lo + dim_head]
            k_h = qkv_c[r0:r0 + N, inner + lo:inner + lo + dim_head]
            v_h = qkv_c[r0:r0 + N, 2 * inner + lo:2 * inner + lo + dim_head]
            # q @ k^T (contract trailing dims of both; no materialized transpose).
            s = jax.lax.dot_general(q_h, k_h, (((1,), (1,)), ((), ())),
                                    preferred_element_type=jnp.float32)  # (N, N)
            s = s - jnp.max(s, axis=-1, keepdims=True)
            e = jnp.exp(s)
            denom = jnp.sum(e, axis=-1, keepdims=True)       # (N, 1)
            # Deferred softmax normalization: exp(s) @ V first, then scale the
            # narrow (N, dim_head) result by the reciprocal row sum (EUP slot).
            u = jnp.dot(e.astype(compute_dtype), v_h,
                        preferred_element_type=jnp.float32)  # (N, dim_head)
            o_h = u * pl.reciprocal(denom, approx=True)
            oslab_ref[r0:r0 + N, lo:lo + dim_head] = o_h.astype(compute_dtype)

    # Single output projection: contraction depth = inner (not dim_head).
    attn_out = jnp.dot(oslab_ref[...], wo_ref[0],
                       preferred_element_type=jnp.float32)   # (Bb*N, D)
    x = x + attn_out + bo_ref[0]                             # residual (f32)

    # ---------------- FeedForward sub-block (pre-LN MLP) ----------------
    xn2 = _layernorm(x, fg_ref[0], fb_ref[0])
    h1 = jnp.dot(xn2.astype(compute_dtype), w1_ref[0],
                 preferred_element_type=jnp.float32) + b1_ref[0]
    # exact GELU (torch.nn.GELU default): 0.5*x*(1+erf(x/sqrt(2)))
    h1 = 0.5 * h1 * (1.0 + jax.lax.erf(h1 * (1.0 / math.sqrt(2.0))))
    y = jnp.dot(h1.astype(compute_dtype), w2_ref[0],
                preferred_element_type=jnp.float32) + b2_ref[0]
    x = x + y                                                # residual (f32)

    act_ref[...] = x

    # Output block is resident across the depth axis: write it exactly once,
    # with the fused final LayerNorm, on the last layer step.
    @pl.when(l == n_layers - 1)
    def _():
        o_ref[0] = _layernorm(x, gn_ref[...], bn_ref[...]).astype(o_ref.dtype)


def transformer_forward(x, params, *, heads, dim_head,
                        batch_block=None,
                        compute_dtype=jnp.bfloat16,
                        weight_buffers=None,
                        vmem_limit_bytes=None):
    B, N, D = x.shape
    layers = params["layers"]
    depth = len(layers)
    inner = heads * dim_head
    scale = dim_head ** -0.5

    # Batch blocking: process Bb sequences per grid step so per-layer weights
    # are streamed from HBM only B/Bb times (once when Bb == B).
    if batch_block is None:
        batch_block = B
    assert B % batch_block == 0, "batch must be divisible by batch_block"
    nb = B // batch_block
    M = batch_block * N

    attn_ps = [a for a, _ in layers]
    ff_ps = [f for _, f in layers]

    # --- stack per-layer params along a leading depth axis (streamed) -----
    ag = jnp.stack([a["ln_g"] for a in attn_ps])            # (depth, 1, D) f32
    ab = jnp.stack([a["ln_b"] for a in attn_ps])
    # Fold the softmax scale into the Q columns; cast MXU weights to bf16.
    col_scale = jnp.concatenate([jnp.full((inner,), scale, jnp.float32),
                                 jnp.ones((2 * inner,), jnp.float32)])
    wqkv = (jnp.stack([a["wqkv"] for a in attn_ps]) * col_scale).astype(compute_dtype)
    wo = jnp.stack([a["wo"] for a in attn_ps]).astype(compute_dtype)
    bo = jnp.stack([a["bo"] for a in attn_ps])              # (depth, 1, D) f32
    fg = jnp.stack([f["ln_g"] for f in ff_ps])
    fb = jnp.stack([f["ln_b"] for f in ff_ps])
    w1 = jnp.stack([f["w1"] for f in ff_ps]).astype(compute_dtype)
    b1 = jnp.stack([f["b1"] for f in ff_ps])                # (depth, 1, H) f32
    w2 = jnp.stack([f["w2"] for f in ff_ps]).astype(compute_dtype)
    b2 = jnp.stack([f["b2"] for f in ff_ps])
    H = w1.shape[-1]

    # Merge each batch block's sequences into one row-major slab (free reshape
    # at the XLA level); the kernel works on (Bb*N, D) 2-D activations.
    x_blocked = x.reshape(nb, M, D)

    def wspec(r, c, buffered=False):       # streamed per-layer weight matrix
        if buffered and weight_buffers is not None and weight_buffers != 2:
            return pl.BlockSpec((1, r, c), lambda bb, l: (l, 0, 0),
                                pipeline_mode=pl.Buffered(weight_buffers))
        return pl.BlockSpec((1, r, c), lambda bb, l: (l, 0, 0))

    def vspec(c):                          # streamed per-layer (1, c) row vector
        return pl.BlockSpec((1, 1, c), lambda bb, l: (l, 0, 0))

    if vmem_limit_bytes is None:
        vmem_limit_bytes = _default_vmem_limit()

    kernel = functools.partial(_transformer_kernel, heads=heads,
                               dim_head=dim_head, seq_len=N,
                               batch_block=batch_block,
                               compute_dtype=compute_dtype)

    out = pl.pallas_call(
        kernel,
        out_shape=jax.ShapeDtypeStruct((nb, M, D), x.dtype),
        grid=(nb, depth),
        in_specs=[
            pl.BlockSpec((1, M, D), lambda bb, l: (bb, 0, 0)),   # x (read once / block)
            vspec(D), vspec(D),                                  # attn LN gamma/beta
            wspec(D, 3 * inner, buffered=True),                  # wqkv (bf16, scaled)
            wspec(inner, D, buffered=True),                      # wo   (bf16)
            vspec(D),                                            # bo
            vspec(D), vspec(D),                                  # ff LN gamma/beta
            wspec(D, H, buffered=True), vspec(H),                # w1, b1
            wspec(H, D, buffered=True), vspec(D),                # w2, b2
            pl.BlockSpec((1, D), lambda bb, l: (0, 0)),          # final gamma
            pl.BlockSpec((1, D), lambda bb, l: (0, 0)),          # final beta
        ],
        out_specs=pl.BlockSpec((1, M, D), lambda bb, l: (bb, 0, 0)),
        scratch_shapes=[
            pltpu.VMEM((M, D), jnp.float32),        # resident f32 residual stream
            pltpu.VMEM((M, inner), compute_dtype),  # per-head attention output slab
        ],
        compiler_params=pltpu.CompilerParams(
            dimension_semantics=("parallel", "arbitrary"),
            vmem_limit_bytes=vmem_limit_bytes),
    )(x_blocked, ag, ab, wqkv, wo, bo, fg, fb, w1, b1, w2, b2,
      params["final_g"], params["final_b"])
    return out.reshape(B, N, D)


# ---------------------------------------------------------------------------
# Pure-JAX reference (f32) for a loose numerical sanity check.
# ---------------------------------------------------------------------------
def transformer_reference(x, params, *, heads, dim_head):
    scale = dim_head ** -0.5

    def ln(v, g, b):
        m = jnp.mean(v, axis=-1, keepdims=True)
        var = jnp.mean((v - m) ** 2, axis=-1, keepdims=True)
        return (v - m) / jnp.sqrt(var + EPS) * g + b

    B, N, _ = x.shape
    inner = heads * dim_head
    for attn_p, ff_p in params["layers"]:
        xn = ln(x, attn_p["ln_g"], attn_p["ln_b"])
        qkv = xn @ attn_p["wqkv"]
        q, k, v = jnp.split(qkv, 3, axis=-1)

        def split_heads(t):
            return t.reshape(B, N, heads, dim_head).transpose(0, 2, 1, 3)

        q, k, v = map(split_heads, (q, k, v))
        s = jnp.einsum('bhnd,bhmd->bhnm', q, k) * scale
        p = jax.nn.softmax(s, axis=-1)
        o = jnp.einsum('bhnm,bhmd->bhnd', p, v)
        o = o.transpose(0, 2, 1, 3).reshape(B, N, inner)
        x = x + o @ attn_p["wo"] + attn_p["bo"]

        xn2 = ln(x, ff_p["ln_g"], ff_p["ln_b"])
        h1 = xn2 @ ff_p["w1"] + ff_p["b1"]
        h1 = 0.5 * h1 * (1.0 + jax.lax.erf(h1 / jnp.sqrt(2.0)))
        x = x + h1 @ ff_p["w2"] + ff_p["b2"]
    return ln(x, params["final_g"], params["final_b"])


# ---------------------------------------------------------------------------
# Parameter init (deterministic, synthetic weights)
# ---------------------------------------------------------------------------
def init_params(key, dim, depth, heads, dim_head, mlp_dim):
    inner = heads * dim_head
    params = {"layers": [], "final_g": jnp.ones((1, dim), jnp.float32),
              "final_b": jnp.zeros((1, dim), jnp.float32)}
    for _ in range(depth):
        key, k1, k2, k3, k4 = jax.random.split(key, 5)
        attn = dict(
            ln_g=jnp.ones((1, dim), jnp.float32),
            ln_b=jnp.zeros((1, dim), jnp.float32),
            wqkv=0.02 * jax.random.normal(k1, (dim, 3 * inner), jnp.float32),
            wo=0.02 * jax.random.normal(k2, (inner, dim), jnp.float32),
            bo=jnp.zeros((1, dim), jnp.float32),
        )
        ff = dict(
            ln_g=jnp.ones((1, dim), jnp.float32),
            ln_b=jnp.zeros((1, dim), jnp.float32),
            w1=0.02 * jax.random.normal(k3, (dim, mlp_dim), jnp.float32),
            b1=jnp.zeros((1, mlp_dim), jnp.float32),
            w2=0.02 * jax.random.normal(k4, (mlp_dim, dim), jnp.float32),
            b2=jnp.zeros((1, dim), jnp.float32),
        )
        params["layers"].append((attn, ff))
    return params


if __name__ == "__main__":
    B, N = 2, 8
    dim, depth, heads, dim_head, mlp_dim = 32, 2, 4, 8, 64

    key = jax.random.PRNGKey(0)
    key_p, key_x = jax.random.split(key)
    params = init_params(key_p, dim, depth, heads, dim_head, mlp_dim)
    x = jax.random.normal(key_x, (B, N, dim), jnp.float32)

    y = transformer_forward(x, params, heads=heads, dim_head=dim_head)
    jax.block_until_ready(y)
    assert y.shape == (B, N, dim)
    assert bool(jnp.all(jnp.isfinite(y)))

    # Loose tolerance: bf16 matmuls + approx reciprocal vs. f32 reference.
    y_ref = transformer_reference(x, params, heads=heads, dim_head=dim_head)
    max_diff = float(jnp.max(jnp.abs(y - y_ref)))
    assert max_diff < 5e-2, f"max abs diff {max_diff}"

    print("KERNEL_OK")
</pallas_src>

<mosaic_0001>
module attributes {stable_mosaic.version = 11 : i64} {
  func.func @_transformer_kernel(%arg0: i32, %arg1: i32, %arg2: memref<1x16x32xf32, #tpu.memory_space<vmem>>, %arg3: memref<1x1x32xf32, #tpu.memory_space<vmem>>, %arg4: memref<1x1x32xf32, #tpu.memory_space<vmem>>, %arg5: memref<1x32x96xbf16, #tpu.memory_space<vmem>>, %arg6: memref<1x32x32xbf16, #tpu.memory_space<vmem>>, %arg7: memref<1x1x32xf32, #tpu.memory_space<vmem>>, %arg8: memref<1x1x32xf32, #tpu.memory_space<vmem>>, %arg9: memref<1x1x32xf32, #tpu.memory_space<vmem>>, %arg10: memref<1x32x64xbf16, #tpu.memory_space<vmem>>, %arg11: memref<1x1x64xf32, #tpu.memory_space<vmem>>, %arg12: memref<1x64x32xbf16, #tpu.memory_space<vmem>>, %arg13: memref<1x1x32xf32, #tpu.memory_space<vmem>>, %arg14: memref<1x32xf32, #tpu.memory_space<vmem>>, %arg15: memref<1x32xf32, #tpu.memory_space<vmem>>, %arg16: memref<1x16x32xf32, #tpu.memory_space<vmem>>, %arg17: memref<16x32xf32, #tpu.memory_space<vmem>>, %arg18: memref<16x32xbf16, #tpu.memory_space<vmem>>) attributes {dimension_semantics = [#tpu.dimension_semantics<parallel>, #tpu.dimension_semantics<arbitrary>], iteration_bounds = array<i64: 1, 2>, scalar_prefetch = 0 : i64, scratch_operands = 2 : i64, tpu.core_type = #tpu.core_type<tc>, window_params = [{transform_indices = @transform_0, window_bounds = array<i64: 1, 16, 32>}, {transform_indices = @transform_1, window_bounds = array<i64: 1, 1, 32>}, {transform_indices = @transform_2, window_bounds = array<i64: 1, 1, 32>}, {transform_indices = @transform_3, window_bounds = array<i64: 1, 32, 96>}, {transform_indices = @transform_4, window_bounds = array<i64: 1, 32, 32>}, {transform_indices = @transform_5, window_bounds = array<i64: 1, 1, 32>}, {transform_indices = @transform_6, window_bounds = array<i64: 1, 1, 32>}, {transform_indices = @transform_7, window_bounds = array<i64: 1, 1, 32>}, {transform_indices = @transform_8, window_bounds = array<i64: 1, 32, 64>}, {transform_indices = @transform_9, window_bounds = array<i64: 1, 1, 64>}, {transform_indices = @transform_10, window_bounds = array<i64: 1, 64, 32>}, {transform_indices = @transform_11, window_bounds = array<i64: 1, 1, 32>}, {pipeline_mode = #tpu.pipeline_mode<synchronous>, transform_indices = @transform_12, window_bounds = array<i64: 1, 32>}, {pipeline_mode = #tpu.pipeline_mode<synchronous>, transform_indices = @transform_13, window_bounds = array<i64: 1, 32>}, {transform_indices = @transform_14, window_bounds = array<i64: 1, 16, 32>}]} {
    %c0_i32 = arith.constant 0 : i32
    %0 = arith.cmpi eq, %arg1, %c0_i32 : i32
    %1 = arith.extui %0 : i1 to i32
    %c0_i32_0 = arith.constant 0 : i32
    %2 = arith.cmpi ne, %1, %c0_i32_0 : i32
    scf.if %2 {
      %c0_101 = arith.constant 0 : index
      %c0_102 = arith.constant 0 : index
      %c0_103 = arith.constant 0 : index
      %243 = vector.load %arg2[%c0_101, %c0_102, %c0_103] : memref<1x16x32xf32, #tpu.memory_space<vmem>>, vector<1x16x32xf32>
      %244 = vector.shape_cast %243 : vector<1x16x32xf32> to vector<16x32xf32>
      %c0_104 = arith.constant 0 : index
      %c0_105 = arith.constant 0 : index
      %245 = vector.load %arg17[%c0_104, %c0_105] : memref<16x32xf32, #tpu.memory_space<vmem>>, vector<16x32xf32>
      tpu.vector_store %arg17[%c0_104, %c0_105], %244 {strides = array<i32>} : memref<16x32xf32, #tpu.memory_space<vmem>>, vector<16x32xf32>,
    } else {
    }
    %c0 = arith.constant 0 : index
    %c0_1 = arith.constant 0 : index
    %3 = vector.load %arg17[%c0, %c0_1] : memref<16x32xf32, #tpu.memory_space<vmem>>, vector<16x32xf32>
    %c0_2 = arith.constant 0 : index
    %c0_3 = arith.constant 0 : index
    %c0_4 = arith.constant 0 : index
    %4 = vector.load %arg3[%c0_2, %c0_3, %c0_4] : memref<1x1x32xf32, #tpu.memory_space<vmem>>, vector<1x1x32xf32>
    %5 = vector.shape_cast %4 : vector<1x1x32xf32> to vector<1x32xf32>
    %c0_5 = arith.constant 0 : index
    %c0_6 = arith.constant 0 : index
    %c0_7 = arith.constant 0 : index
    %6 = vector.load %arg4[%c0_5, %c0_6, %c0_7] : memref<1x1x32xf32, #tpu.memory_space<vmem>>, vector<1x1x32xf32>
    %7 = vector.shape_cast %6 : vector<1x1x32xf32> to vector<1x32xf32>
    %cst = arith.constant dense<0.000000e+00> : vector<16xf32>
    %8 = vector.multi_reduction <add>, %3, %cst [1] : vector<16x32xf32> to vector<16xf32>
    %9 = vector.shape_cast %8 : vector<16xf32> to vector<16x1xf32>
    %cst_8 = arith.constant 3.200000e+01 : f32
    %10 = vector.broadcast %cst_8 : f32 to vector<16x1xf32>
    %11 = arith.divf %9, %10 : vector<16x1xf32>
    %12 = vector.broadcast %11 : vector<16x1xf32> to vector<16x32xf32>
    %13 = arith.subf %3, %12 : vector<16x32xf32>
    %14 = arith.mulf %13, %13 : vector<16x32xf32>
    %cst_9 = arith.constant dense<0.000000e+00> : vector<16xf32>
    %15 = vector.multi_reduction <add>, %14, %cst_9 [1] : vector<16x32xf32> to vector<16xf32>
    %16 = vector.shape_cast %15 : vector<16xf32> to vector<16x1xf32>
    %cst_10 = arith.constant 3.200000e+01 : f32
    %17 = vector.broadcast %cst_10 : f32 to vector<16x1xf32>
    %18 = arith.divf %16, %17 : vector<16x1xf32>
    %19 = vector.broadcast %11 : vector<16x1xf32> to vector<16x32xf32>
    %20 = arith.subf %3, %19 : vector<16x32xf32>
    %cst_11 = arith.constant 9.99999974E-6 : f32
    %21 = vector.broadcast %cst_11 : f32 to vector<16x1xf32>
    %22 = arith.addf %18, %21 : vector<16x1xf32>
    %23 = math.rsqrt %22 : vector<16x1xf32>
    %24 = vector.broadcast %23 : vector<16x1xf32> to vector<16x32xf32>
    %25 = arith.mulf %20, %24 : vector<16x32xf32>
    %26 = vector.broadcast %5 : vector<1x32xf32> to vector<16x32xf32>
    %27 = arith.mulf %25, %26 : vector<16x32xf32>
    %28 = vector.broadcast %7 : vector<1x32xf32> to vector<16x32xf32>
    %29 = arith.addf %27, %28 : vector<16x32xf32>
    %30 = arith.truncf %29 : vector<16x32xf32> to vector<16x32xbf16>
    %c0_12 = arith.constant 0 : index
    %c0_13 = arith.constant 0 : index
    %c0_14 = arith.constant 0 : index
    %31 = vector.load %arg5[%c0_12, %c0_13, %c0_14] : memref<1x32x96xbf16, #tpu.memory_space<vmem>>, vector<1x32x96xbf16>
    %32 = vector.shape_cast %31 : vector<1x32x96xbf16> to vector<32x96xbf16>
    %cst_15 = arith.constant dense<0.000000e+00> : vector<16x96xf32>
    %33 = tpu.matmul %30, %32, %cst_15 {dimension_numbers = #tpu.dot_dimension_numbers<[1], [0], [0], [1], [0, 0, 1, 1], [], []>} : vector<16x32xbf16>, vector<32x96xbf16>, vector<16x96xf32> -> vector<16x96xf32>
    %34 = arith.truncf %33 : vector<16x96xf32> to vector<16x96xbf16>
    %35 = vector.extract_strided_slice %34 {offsets = [0, 0], sizes = [8, 8], strides = [1, 1]} : vector<16x96xbf16> to vector<8x8xbf16>
    %36 = vector.extract_strided_slice %34 {offsets = [0, 32], sizes = [8, 8], strides = [1, 1]} : vector<16x96xbf16> to vector<8x8xbf16>
    %37 = vector.extract_strided_slice %34 {offsets = [0, 64], sizes = [8, 8], strides = [1, 1]} : vector<16x96xbf16> to vector<8x8xbf16>
    %cst_16 = arith.constant dense<0.000000e+00> : vector<8x8xf32>
    %38 = tpu.matmul %35, %36, %cst_16 {dimension_numbers = #tpu.dot_dimension_numbers<[1], [1], [0], [0], [0, 0, 1, 0], [], []>} : vector<8x8xbf16>, vector<8x8xbf16>, vector<8x8xf32> -> vector<8x8xf32>
    %cst_17 = arith.constant dense<0xFF800000> : vector<8xf32>
    %39 = vector.multi_reduction <maximumf>, %38, %cst_17 [1] : vector<8x8xf32> to vector<8xf32>
    %40 = vector.shape_cast %39 : vector<8xf32> to vector<8x1xf32>
    %41 = vector.broadcast %40 : vector<8x1xf32> to vector<8x8xf32>
    %42 = arith.subf %38, %41 : vector<8x8xf32>
    %43 = math.exp %42 : vector<8x8xf32>
    %cst_18 = arith.constant dense<0.000000e+00> : vector<8xf32>
    %44 = vector.multi_reduction <add>, %43, %cst_18 [1] : vector<8x8xf32> to vector<8xf32>
    %45 = vector.shape_cast %44 : vector<8xf32> to vector<8x1xf32>
    %46 = arith.truncf %43 : vector<8x8xf32> to vector<8x8xbf16>
    %cst_19 = arith.constant dense<0.000000e+00> : vector<8x8xf32>
    %47 = tpu.matmul %46, %37, %cst_19 {dimension_numbers = #tpu.dot_dimension_numbers<[1], [0], [0], [1], [0, 0, 1, 1], [], []>} : vector<8x8xbf16>, vector<8x8xbf16>, vector<8x8xf32> -> vector<8x8xf32>
    %48 = tpu.reciprocal %45 {approx = true} : vector<8x1xf32> -> vector<8x1xf32>
    %49 = vector.broadcast %48 : vector<8x1xf32> to vector<8x8xf32>
    %50 = arith.mulf %47, %49 : vector<8x8xf32>
    %51 = arith.truncf %50 : vector<8x8xf32> to vector<8x8xbf16>
    %c0_20 = arith.constant 0 : index
    %c0_21 = arith.constant 0 : index
    %52 = vector.load %arg18[%c0_20, %c0_21] : memref<16x32xbf16, #tpu.memory_space<vmem>>, vector<8x8xbf16>
    tpu.vector_store %arg18[%c0_20, %c0_21], %51 {strides = array<i32>} : memref<16x32xbf16, #tpu.memory_space<vmem>>, vector<8x8xbf16>,
    %53 = vector.extract_strided_slice %34 {offsets = [0, 8], sizes = [8, 8], strides = [1, 1]} : vector<16x96xbf16> to vector<8x8xbf16>
    %54 = vector.extract_strided_slice %34 {offsets = [0, 40], sizes = [8, 8], strides = [1, 1]} : vector<16x96xbf16> to vector<8x8xbf16>
    %55 = vector.extract_strided_slice %34 {offsets = [0, 72], sizes = [8, 8], strides = [1, 1]} : vector<16x96xbf16> to vector<8x8xbf16>
    %cst_22 = arith.constant dense<0.000000e+00> : vector<8x8xf32>
    %56 = tpu.matmul %53, %54, %cst_22 {dimension_numbers = #tpu.dot_dimension_numbers<[1], [1], [0], [0], [0, 0, 1, 0], [], []>} : vector<8x8xbf16>, vector<8x8xbf16>, vector<8x8xf32> -> vector<8x8xf32>
    %cst_23 = arith.constant dense<0xFF800000> : vector<8xf32>
    %57 = vector.multi_reduction <maximumf>, %56, %cst_23 [1] : vector<8x8xf32> to vector<8xf32>
    %58 = vector.shape_cast %57 : vector<8xf32> to vector<8x1xf32>
    %59 = vector.broadcast %58 : vector<8x1xf32> to vector<8x8xf32>
    %60 = arith.subf %56, %59 : vector<8x8xf32>
    %61 = math.exp %60 : vector<8x8xf32>
    %cst_24 = arith.constant dense<0.000000e+00> : vector<8xf32>
    %62 = vector.multi_reduction <add>, %61, %cst_24 [1] : vector<8x8xf32> to vector<8xf32>
    %63 = vector.shape_cast %62 : vector<8xf32> to vector<8x1xf32>
    %64 = arith.truncf %61 : vector<8x8xf32> to vector<8x8xbf16>
    %cst_25 = arith.constant dense<0.000000e+00> : vector<8x8xf32>
    %65 = tpu.matmul %64, %55, %cst_25 {dimension_numbers = #tpu.dot_dimension_numbers<[1], [0], [0], [1], [0, 0, 1, 1], [], []>} : vector<8x8xbf16>, vector<8x8xbf16>, vector<8x8xf32> -> vector<8x8xf32>
    %66 = tpu.reciprocal %63 {approx = true} : vector<8x1xf32> -> vector<8x1xf32>
    %67 = vector.broadcast %66 : vector<8x1xf32> to vector<8x8xf32>
    %68 = arith.mulf %65, %67 : vector<8x8xf32>
    %69 = arith.truncf %68 : vector<8x8xf32> to vector<8x8xbf16>
    %c0_26 = arith.constant 0 : index
    %c8 = arith.constant 8 : index
    %70 = vector.load %arg18[%c0_26, %c8] : memref<16x32xbf16, #tpu.memory_space<vmem>>, vector<8x8xbf16>
    tpu.vector_store %arg18[%c0_26, %c8], %69 {strides = array<i32>} : memref<16x32xbf16, #tpu.memory_space<vmem>>, vector<8x8xbf16>,
    %71 = vector.extract_strided_slice %34 {offsets = [0, 16], sizes = [8, 8], strides = [1, 1]} : vector<16x96xbf16> to vector<8x8xbf16>
    %72 = vector.extract_strided_slice %34 {offsets = [0, 48], sizes = [8, 8], strides = [1, 1]} : vector<16x96xbf16> to vector<8x8xbf16>
    %73 = vector.extract_strided_slice %34 {offsets = [0, 80], sizes = [8, 8], strides = [1, 1]} : vector<16x96xbf16> to vector<8x8xbf16>
    %cst_27 = arith.constant dense<0.000000e+00> : vector<8x8xf32>
    %74 = tpu.matmul %71, %72, %cst_27 {dimension_numbers = #tpu.dot_dimension_numbers<[1], [1], [0], [0], [0, 0, 1, 0], [], []>} : vector<8x8xbf16>, vector<8x8xbf16>, vector<8x8xf32> -> vector<8x8xf32>
    %cst_28 = arith.constant dense<0xFF800000> : vector<8xf32>
    %75 = vector.multi_reduction <maximumf>, %74, %cst_28 [1] : vector<8x8xf32> to vector<8xf32>
    %76 = vector.shape_cast %75 : vector<8xf32> to vector<8x1xf32>
    %77 = vector.broadcast %76 : vector<8x1xf32> to vector<8x8xf32>
    %78 = arith.subf %74, %77 : vector<8x8xf32>
    %79 = math.exp %78 : vector<8x8xf32>
    %cst_29 = arith.constant dense<0.000000e+00> : vector<8xf32>
    %80 = vector.multi_reduction <add>, %79, %cst_29 [1] : vector<8x8xf32> to vector<8xf32>
    %81 = vector.shape_cast %80 : vector<8xf32> to vector<8x1xf32>
    %82 = arith.truncf %79 : vector<8x8xf32> to vector<8x8xbf16>
    %cst_30 = arith.constant dense<0.000000e+00> : vector<8x8xf32>
    %83 = tpu.matmul %82, %73, %cst_30 {dimension_numbers = #tpu.dot_dimension_numbers<[1], [0], [0], [1], [0, 0, 1, 1], [], []>} : vector<8x8xbf16>, vector<8x8xbf16>, vector<8x8xf32> -> vector<8x8xf32>
    %84 = tpu.reciprocal %81 {approx = true} : vector<8x1xf32> -> vector<8x1xf32>
    %85 = vector.broadcast %84 : vector<8x1xf32> to vector<8x8xf32>
    %86 = arith.mulf %83, %85 : vector<8x8xf32>
    %87 = arith.truncf %86 : vector<8x8xf32> to vector<8x8xbf16>
    %c0_31 = arith.constant 0 : index
    %c16 = arith.constant 16 : index
    %88 = vector.load %arg18[%c0_31, %c16] : memref<16x32xbf16, #tpu.memory_space<vmem>>, vector<8x8xbf16>
    tpu.vector_store %arg18[%c0_31, %c16], %87 {strides = array<i32>} : memref<16x32xbf16, #tpu.memory_space<vmem>>, vector<8x8xbf16>,
    %89 = vector.extract_strided_slice %34 {offsets = [0, 24], sizes = [8, 8], strides = [1, 1]} : vector<16x96xbf16> to vector<8x8xbf16>
    %90 = vector.extract_strided_slice %34 {offsets = [0, 56], sizes = [8, 8], strides = [1, 1]} : vector<16x96xbf16> to vector<8x8xbf16>
    %91 = vector.extract_strided_slice %34 {offsets = [0, 88], sizes = [8, 8], strides = [1, 1]} : vector<16x96xbf16> to vector<8x8xbf16>
    %cst_32 = arith.constant dense<0.000000e+00> : vector<8x8xf32>
    %92 = tpu.matmul %89, %90, %cst_32 {dimension_numbers = #tpu.dot_dimension_numbers<[1], [1], [0], [0], [0, 0, 1, 0], [], []>} : vector<8x8xbf16>, vector<8x8xbf16>, vector<8x8xf32> -> vector<8x8xf32>
    %cst_33 = arith.constant dense<0xFF800000> : vector<8xf32>
    %93 = vector.multi_reduction <maximumf>, %92, %cst_33 [1] : vector<8x8xf32> to vector<8xf32>
    %94 = vector.shape_cast %93 : vector<8xf32> to vector<8x1xf32>
    %95 = vector.broadcast %94 : vector<8x1xf32> to vector<8x8xf32>
    %96 = arith.subf %92, %95 : vector<8x8xf32>
    %97 = math.exp %96 : vector<8x8xf32>
    %cst_34 = arith.constant dense<0.000000e+00> : vector<8xf32>
    %98 = vector.multi_reduction <add>, %97, %cst_34 [1] : vector<8x8xf32> to vector<8xf32>
    %99 = vector.shape_cast %98 : vector<8xf32> to vector<8x1xf32>
    %100 = arith.truncf %97 : vector<8x8xf32> to vector<8x8xbf16>
    %cst_35 = arith.constant dense<0.000000e+00> : vector<8x8xf32>
    %101 = tpu.matmul %100, %91, %cst_35 {dimension_numbers = #tpu.dot_dimension_numbers<[1], [0], [0], [1], [0, 0, 1, 1], [], []>} : vector<8x8xbf16>, vector<8x8xbf16>, vector<8x8xf32> -> vector<8x8xf32>
    %102 = tpu.reciprocal %99 {approx = true} : vector<8x1xf32> -> vector<8x1xf32>
    %103 = vector.broadcast %102 : vector<8x1xf32> to vector<8x8xf32>
    %104 = arith.mulf %101, %103 : vector<8x8xf32>
    %105 = arith.truncf %104 : vector<8x8xf32> to vector<8x8xbf16>
    %c0_36 = arith.constant 0 : index
    %c24 = arith.constant 24 : index
    %106 = vector.load %arg18[%c0_36, %c24] : memref<16x32xbf16, #tpu.memory_space<vmem>>, vector<8x8xbf16>
    tpu.vector_store %arg18[%c0_36, %c24], %105 {strides = array<i32>} : memref<16x32xbf16, #tpu.memory_space<vmem>>, vector<8x8xbf16>,
    %107 = vector.extract_strided_slice %34 {offsets = [8, 0], sizes = [8, 8], strides = [1, 1]} : vector<16x96xbf16> to vector<8x8xbf16>
    %108 = vector.extract_strided_slice %34 {offsets = [8, 32], sizes = [8, 8], strides = [1, 1]} : vector<16x96xbf16> to vector<8x8xbf16>
    %109 = vector.extract_strided_slice %34 {offsets = [8, 64], sizes = [8, 8], strides = [1, 1]} : vector<16x96xbf16> to vector<8x8xbf16>
    %cst_37 = arith.constant dense<0.000000e+00> : vector<8x8xf32>
    %110 = tpu.matmul %107, %108, %cst_37 {dimension_numbers = #tpu.dot_dimension_numbers<[1], [1], [0], [0], [0, 0, 1, 0], [], []>} : vector<8x8xbf16>, vector<8x8xbf16>, vector<8x8xf32> -> vector<8x8xf32>
    %cst_38 = arith.constant dense<0xFF800000> : vector<8xf32>
    %111 = vector.multi_reduction <maximumf>, %110, %cst_38 [1] : vector<8x8xf32> to vector<8xf32>
    %112 = vector.shape_cast %111 : vector<8xf32> to vector<8x1xf32>
    %113 = vector.broadcast %112 : vector<8x1xf32> to vector<8x8xf32>
    %114 = arith.subf %110, %113 : vector<8x8xf32>
    %115 = math.exp %114 : vector<8x8xf32>
    %cst_39 = arith.constant dense<0.000000e+00> : vector<8xf32>
    %116 = vector.multi_reduction <add>, %115, %cst_39 [1] : vector<8x8xf32> to vector<8xf32>
    %117 = vector.shape_cast %116 : vector<8xf32> to vector<8x1xf32>
    %118 = arith.truncf %115 : vector<8x8xf32> to vector<8x8xbf16>
    %cst_40 = arith.constant dense<0.000000e+00> : vector<8x8xf32>
    %119 = tpu.matmul %118, %109, %cst_40 {dimension_numbers = #tpu.dot_dimension_numbers<[1], [0], [0], [1], [0, 0, 1, 1], [], []>} : vector<8x8xbf16>, vector<8x8xbf16>, vector<8x8xf32> -> vector<8x8xf32>
    %120 = tpu.reciprocal %117 {approx = true} : vector<8x1xf32> -> vector<8x1xf32>
    %121 = vector.broadcast %120 : vector<8x1xf32> to vector<8x8xf32>
    %122 = arith.mulf %119, %121 : vector<8x8xf32>
    %123 = arith.truncf %122 : vector<8x8xf32> to vector<8x8xbf16>
    %c8_41 = arith.constant 8 : index
    %c0_42 = arith.constant 0 : index
    %124 = vector.load %arg18[%c8_41, %c0_42] : memref<16x32xbf16, #tpu.memory_space<vmem>>, vector<8x8xbf16>
    tpu.vector_store %arg18[%c8_41, %c0_42], %123 {strides = array<i32>} : memref<16x32xbf16, #tpu.memory_space<vmem>>, vector<8x8xbf16>,
    %125 = vector.extract_strided_slice %34 {offsets = [8, 8], sizes = [8, 8], strides = [1, 1]} : vector<16x96xbf16> to vector<8x8xbf16>
    %126 = vector.extract_strided_slice %34 {offsets = [8, 40], sizes = [8, 8], strides = [1, 1]} : vector<16x96xbf16> to vector<8x8xbf16>
    %127 = vector.extract_strided_slice %34 {offsets = [8, 72], sizes = [8, 8], strides = [1, 1]} : vector<16x96xbf16> to vector<8x8xbf16>
    %cst_43 = arith.constant dense<0.000000e+00> : vector<8x8xf32>
    %128 = tpu.matmul %125, %126, %cst_43 {dimension_numbers = #tpu.dot_dimension_numbers<[1], [1], [0], [0], [0, 0, 1, 0], [], []>} : vector<8x8xbf16>, vector<8x8xbf16>, vector<8x8xf32> -> vector<8x8xf32>
    %cst_44 = arith.constant dense<0xFF800000> : vector<8xf32>
    %129 = vector.multi_reduction <maximumf>, %128, %cst_44 [1] : vector<8x8xf32> to vector<8xf32>
    %130 = vector.shape_cast %129 : vector<8xf32> to vector<8x1xf32>
    %131 = vector.broadcast %130 : vector<8x1xf32> to vector<8x8xf32>
    %132 = arith.subf %128, %131 : vector<8x8xf32>
    %133 = math.exp %132 : vector<8x8xf32>
    %cst_45 = arith.constant dense<0.000000e+00> : vector<8xf32>
    %134 = vector.multi_reduction <add>, %133, %cst_45 [1] : vector<8x8xf32> to vector<8xf32>
    %135 = vector.shape_cast %134 : vector<8xf32> to vector<8x1xf32>
    %136 = arith.truncf %133 : vector<8x8xf32> to vector<8x8xbf16>
    %cst_46 = arith.constant dense<0.000000e+00> : vector<8x8xf32>
    %137 = tpu.matmul %136, %127, %cst_46 {dimension_numbers = #tpu.dot_dimension_numbers<[1], [0], [0], [1], [0, 0, 1, 1], [], []>} : vector<8x8xbf16>, vector<8x8xbf16>, vector<8x8xf32> -> vector<8x8xf32>
    %138 = tpu.reciprocal %135 {approx = true} : vector<8x1xf32> -> vector<8x1xf32>
    %139 = vector.broadcast %138 : vector<8x1xf32> to vector<8x8xf32>
    %140 = arith.mulf %137, %139 : vector<8x8xf32>
    %141 = arith.truncf %140 : vector<8x8xf32> to vector<8x8xbf16>
    %c8_47 = arith.constant 8 : index
    %c8_48 = arith.constant 8 : index
    %142 = vector.load %arg18[%c8_47, %c8_48] : memref<16x32xbf16, #tpu.memory_space<vmem>>, vector<8x8xbf16>
    tpu.vector_store %arg18[%c8_47, %c8_48], %141 {strides = array<i32>} : memref<16x32xbf16, #tpu.memory_space<vmem>>, vector<8x8xbf16>,
    %143 = vector.extract_strided_slice %34 {offsets = [8, 16], sizes = [8, 8], strides = [1, 1]} : vector<16x96xbf16> to vector<8x8xbf16>
    %144 = vector.extract_strided_slice %34 {offsets = [8, 48], sizes = [8, 8], strides = [1, 1]} : vector<16x96xbf16> to vector<8x8xbf16>
    %145 = vector.extract_strided_slice %34 {offsets = [8, 80], sizes = [8, 8], strides = [1, 1]} : vector<16x96xbf16> to vector<8x8xbf16>
    %cst_49 = arith.constant dense<0.000000e+00> : vector<8x8xf32>
    %146 = tpu.matmul %143, %144, %cst_49 {dimension_numbers = #tpu.dot_dimension_numbers<[1], [1], [0], [0], [0, 0, 1, 0], [], []>} : vector<8x8xbf16>, vector<8x8xbf16>, vector<8x8xf32> -> vector<8x8xf32>
    %cst_50 = arith.constant dense<0xFF800000> : vector<8xf32>
    %147 = vector.multi_reduction <maximumf>, %146, %cst_50 [1] : vector<8x8xf32> to vector<8xf32>
    %148 = vector.shape_cast %147 : vector<8xf32> to vector<8x1xf32>
    %149 = vector.broadcast %148 : vector<8x1xf32> to vector<8x8xf32>
    %150 = arith.subf %146, %149 : vector<8x8xf32>
    %151 = math.exp %150 : vector<8x8xf32>
    %cst_51 = arith.constant dense<0.000000e+00> : vector<8xf32>
    %152 = vector.multi_reduction <add>, %151, %cst_51 [1] : vector<8x8xf32> to vector<8xf32>
    %153 = vector.shape_cast %152 : vector<8xf32> to vector<8x1xf32>
    %154 = arith.truncf %151 : vector<8x8xf32> to vector<8x8xbf16>
    %cst_52 = arith.constant dense<0.000000e+00> : vector<8x8xf32>
    %155 = tpu.matmul %154, %145, %cst_52 {dimension_numbers = #tpu.dot_dimension_numbers<[1], [0], [0], [1], [0, 0, 1, 1], [], []>} : vector<8x8xbf16>, vector<8x8xbf16>, vector<8x8xf32> -> vector<8x8xf32>
    %156 = tpu.reciprocal %153 {approx = true} : vector<8x1xf32> -> vector<8x1xf32>
    %157 = vector.broadcast %156 : vector<8x1xf32> to vector<8x8xf32>
    %158 = arith.mulf %155, %157 : vector<8x8xf32>
    %159 = arith.truncf %158 : vector<8x8xf32> to vector<8x8xbf16>
    %c8_53 = arith.constant 8 : index
    %c16_54 = arith.constant 16 : index
    %160 = vector.load %arg18[%c8_53, %c16_54] : memref<16x32xbf16, #tpu.memory_space<vmem>>, vector<8x8xbf16>
    tpu.vector_store %arg18[%c8_53, %c16_54], %159 {strides = array<i32>} : memref<16x32xbf16, #tpu.memory_space<vmem>>, vector<8x8xbf16>,
    %161 = vector.extract_strided_slice %34 {offsets = [8, 24], sizes = [8, 8], strides = [1, 1]} : vector<16x96xbf16> to vector<8x8xbf16>
    %162 = vector.extract_strided_slice %34 {offsets = [8, 56], sizes = [8, 8], strides = [1, 1]} : vector<16x96xbf16> to vector<8x8xbf16>
    %163 = vector.extract_strided_slice %34 {offsets = [8, 88], sizes = [8, 8], strides = [1, 1]} : vector<16x96xbf16> to vector<8x8xbf16>
    %cst_55 = arith.constant dense<0.000000e+00> : vector<8x8xf32>
    %164 = tpu.matmul %161, %162, %cst_55 {dimension_numbers = #tpu.dot_dimension_numbers<[1], [1], [0], [0], [0, 0, 1, 0], [], []>} : vector<8x8xbf16>, vector<8x8xbf16>, vector<8x8xf32> -> vector<8x8xf32>
    %cst_56 = arith.constant dense<0xFF800000> : vector<8xf32>
    %165 = vector.multi_reduction <maximumf>, %164, %cst_56 [1] : vector<8x8xf32> to vector<8xf32>
    %166 = vector.shape_cast %165 : vector<8xf32> to vector<8x1xf32>
    %167 = vector.broadcast %166 : vector<8x1xf32> to vector<8x8xf32>
    %168 = arith.subf %164, %167 : vector<8x8xf32>
    %169 = math.exp %168 : vector<8x8xf32>
    %cst_57 = arith.constant dense<0.000000e+00> : vector<8xf32>
    %170 = vector.multi_reduction <add>, %169, %cst_57 [1] : vector<8x8xf32> to vector<8xf32>
    %171 = vector.shape_cast %170 : vector<8xf32> to vector<8x1xf32>
    %172 = arith.truncf %169 : vector<8x8xf32> to vector<8x8xbf16>
    %cst_58 = arith.constant dense<0.000000e+00> : vector<8x8xf32>
    %173 = tpu.matmul %172, %163, %cst_58 {dimension_numbers = #tpu.dot_dimension_numbers<[1], [0], [0], [1], [0, 0, 1, 1], [], []>} : vector<8x8xbf16>, vector<8x8xbf16>, vector<8x8xf32> -> vector<8x8xf32>
    %174 = tpu.reciprocal %171 {approx = true} : vector<8x1xf32> -> vector<8x1xf32>
    %175 = vector.broadcast %174 : vector<8x1xf32> to vector<8x8xf32>
    %176 = arith.mulf %173, %175 : vector<8x8xf32>
    %177 = arith.truncf %176 : vector<8x8xf32> to vector<8x8xbf16>
    %c8_59 = arith.constant 8 : index
    %c24_60 = arith.constant 24 : index
    %178 = vector.load %arg18[%c8_59, %c24_60] : memref<16x32xbf16, #tpu.memory_space<vmem>>, vector<8x8xbf16>
    tpu.vector_store %arg18[%c8_59, %c24_60], %177 {strides = array<i32>} : memref<16x32xbf16, #tpu.memory_space<vmem>>, vector<8x8xbf16>,
    %c0_61 = arith.constant 0 : index
    %c0_62 = arith.constant 0 : index
    %179 = vector.load %arg18[%c0_61, %c0_62] : memref<16x32xbf16, #tpu.memory_space<vmem>>, vector<16x32xbf16>
    %c0_63 = arith.constant 0 : index
    %c0_64 = arith.constant 0 : index
    %c0_65 = arith.constant 0 : index
    %180 = vector.load %arg6[%c0_63, %c0_64, %c0_65] : memref<1x32x32xbf16, #tpu.memory_space<vmem>>, vector<1x32x32xbf16>
    %181 = vector.shape_cast %180 : vector<1x32x32xbf16> to vector<32x32xbf16>
    %cst_66 = arith.constant dense<0.000000e+00> : vector<16x32xf32>
    %182 = tpu.matmul %179, %181, %cst_66 {dimension_numbers = #tpu.dot_dimension_numbers<[1], [0], [0], [1], [0, 0, 1, 1], [], []>} : vector<16x32xbf16>, vector<32x32xbf16>, vector<16x32xf32> -> vector<16x32xf32>
    %183 = arith.addf %3, %182 : vector<16x32xf32>
    %c0_67 = arith.constant 0 : index
    %c0_68 = arith.constant 0 : index
    %c0_69 = arith.constant 0 : index
    %184 = vector.load %arg7[%c0_67, %c0_68, %c0_69] : memref<1x1x32xf32, #tpu.memory_space<vmem>>, vector<1x1x32xf32>
    %185 = vector.shape_cast %184 : vector<1x1x32xf32> to vector<1x32xf32>
    %186 = vector.broadcast %185 : vector<1x32xf32> to vector<16x32xf32>
    %187 = arith.addf %183, %186 : vector<16x32xf32>
    %c0_70 = arith.constant 0 : index
    %c0_71 = arith.constant 0 : index
    %c0_72 = arith.constant 0 : index
    %188 = vector.load %arg8[%c0_70, %c0_71, %c0_72] : memref<1x1x32xf32, #tpu.memory_space<vmem>>, vector<1x1x32xf32>
    %189 = vector.shape_cast %188 : vector<1x1x32xf32> to vector<1x32xf32>
    %c0_73 = arith.constant 0 : index
    %c0_74 = arith.constant 0 : index
    %c0_75 = arith.constant 0 : index
    %190 = vector.load %arg9[%c0_73, %c0_74, %c0_75] : memref<1x1x32xf32, #tpu.memory_space<vmem>>, vector<1x1x32xf32>
    %191 = vector.shape_cast %190 : vector<1x1x32xf32> to vector<1x32xf32>
    %cst_76 = arith.constant dense<0.000000e+00> : vector<16xf32>
    %192 = vector.multi_reduction <add>, %187, %cst_76 [1] : vector<16x32xf32> to vector<16xf32>
    %193 = vector.shape_cast %192 : vector<16xf32> to vector<16x1xf32>
    %cst_77 = arith.constant 3.200000e+01 : f32
    %194 = vector.broadcast %cst_77 : f32 to vector<16x1xf32>
    %195 = arith.divf %193, %194 : vector<16x1xf32>
    %196 = vector.broadcast %195 : vector<16x1xf32> to vector<16x32xf32>
    %197 = arith.subf %187, %196 : vector<16x32xf32>
    %198 = arith.mulf %197, %197 : vector<16x32xf32>
    %cst_78 = arith.constant dense<0.000000e+00> : vector<16xf32>
    %199 = vector.multi_reduction <add>, %198, %cst_78 [1] : vector<16x32xf32> to vector<16xf32>
    %200 = vector.shape_cast %199 : vector<16xf32> to vector<16x1xf32>
    %cst_79 = arith.constant 3.200000e+01 : f32
    %201 = vector.broadcast %cst_79 : f32 to vector<16x1xf32>
    %202 = arith.divf %200, %201 : vector<16x1xf32>
    %203 = vector.broadcast %195 : vector<16x1xf32> to vector<16x32xf32>
    %204 = arith.subf %187, %203 : vector<16x32xf32>
    %cst_80 = arith.constant 9.99999974E-6 : f32
    %205 = vector.broadcast %cst_80 : f32 to vector<16x1xf32>
    %206 = arith.addf %202, %205 : vector<16x1xf32>
    %207 = math.rsqrt %206 : vector<16x1xf32>
    %208 = vector.broadcast %207 : vector<16x1xf32> to vector<16x32xf32>
    %209 = arith.mulf %204, %208 : vector<16x32xf32>
    %210 = vector.broadcast %189 : vector<1x32xf32> to vector<16x32xf32>
    %211 = arith.mulf %209, %210 : vector<16x32xf32>
    %212 = vector.broadcast %191 : vector<1x32xf32> to vector<16x32xf32>
    %213 = arith.addf %211, %212 : vector<16x32xf32>
    %214 = arith.truncf %213 : vector<16x32xf32> to vector<16x32xbf16>
    %c0_81 = arith.constant 0 : index
    %c0_82 = arith.constant 0 : index
    %c0_83 = arith.constant 0 : index
    %215 = vector.load %arg10[%c0_81, %c0_82, %c0_83] : memref<1x32x64xbf16, #tpu.memory_space<vmem>>, vector<1x32x64xbf16>
    %216 = vector.shape_cast %215 : vector<1x32x64xbf16> to vector<32x64xbf16>
    %cst_84 = arith.constant dense<0.000000e+00> : vector<16x64xf32>
    %217 = tpu.matmul %214, %216, %cst_84 {dimension_numbers = #tpu.dot_dimension_numbers<[1], [0], [0], [1], [0, 0, 1, 1], [], []>} : vector<16x32xbf16>, vector<32x64xbf16>, vector<16x64xf32> -> vector<16x64xf32>
    %c0_85 = arith.constant 0 : index
    %c0_86 = arith.constant 0 : index
    %c0_87 = arith.constant 0 : index
    %218 = vector.load %arg11[%c0_85, %c0_86, %c0_87] : memref<1x1x64xf32, #tpu.memory_space<vmem>>, vector<1x1x64xf32>
    %219 = vector.shape_cast %218 : vector<1x1x64xf32> to vector<1x64xf32>
    %220 = vector.broadcast %219 : vector<1x64xf32> to vector<16x64xf32>
    %221 = arith.addf %217, %220 : vector<16x64xf32>
    %cst_88 = arith.constant 5.000000e-01 : f32
    %222 = vector.broadcast %cst_88 : f32 to vector<16x64xf32>
    %223 = arith.mulf %222, %221 : vector<16x64xf32>
    %cst_89 = arith.constant 0.707106769 : f32
    %224 = vector.broadcast %cst_89 : f32 to vector<16x64xf32>
    %225 = arith.mulf %221, %224 : vector<16x64xf32>
    %226 = math.erf %225 : vector<16x64xf32>
    %cst_90 = arith.constant 1.000000e+00 : f32
    %227 = vector.broadcast %cst_90 : f32 to vector<16x64xf32>
    %228 = arith.addf %227, %226 : vector<16x64xf32>
    %229 = arith.mulf %223, %228 : vector<16x64xf32>
    %230 = arith.truncf %229 : vector<16x64xf32> to vector<16x64xbf16>
    %c0_91 = arith.constant 0 : index
    %c0_92 = arith.constant 0 : index
    %c0_93 = arith.constant 0 : index
    %231 = vector.load %arg12[%c0_91, %c0_92, %c0_93] : memref<1x64x32xbf16, #tpu.memory_space<vmem>>, vector<1x64x32xbf16>
    %232 = vector.shape_cast %231 : vector<1x64x32xbf16> to vector<64x32xbf16>
    %cst_94 = arith.constant dense<0.000000e+00> : vector<16x32xf32>
    %233 = tpu.matmul %230, %232, %cst_94 {dimension_numbers = #tpu.dot_dimension_numbers<[1], [0], [0], [1], [0, 0, 1, 1], [], []>} : vector<16x64xbf16>, vector<64x32xbf16>, vector<16x32xf32> -> vector<16x32xf32>
    %c0_95 = arith.constant 0 : index
    %c0_96 = arith.constant 0 : index
    %c0_97 = arith.constant 0 : index
    %234 = vector.load %arg13[%c0_95, %c0_96, %c0_97] : memref<1x1x32xf32, #tpu.memory_space<vmem>>, vector<1x1x32xf32>
    %235 = vector.shape_cast %234 : vector<1x1x32xf32> to vector<1x32xf32>
    %236 = vector.broadcast %235 : vector<1x32xf32> to vector<16x32xf32>
    %237 = arith.addf %233, %236 : vector<16x32xf32>
    %238 = arith.addf %187, %237 : vector<16x32xf32>
    %c0_98 = arith.constant 0 : index
    %c0_99 = arith.constant 0 : index
    %239 = vector.load %arg17[%c0_98, %c0_99] : memref<16x32xf32, #tpu.memory_space<vmem>>, vector<16x32xf32>
    tpu.vector_store %arg17[%c0_98, %c0_99], %238 {strides = array<i32>} : memref<16x32xf32, #tpu.memory_space<vmem>>, vector<16x32xf32>,
    %c1_i32 = arith.constant 1 : i32
    %240 = arith.cmpi eq, %arg1, %c1_i32 : i32
    %241 = arith.extui %240 : i1 to i32
    %c0_i32_100 = arith.constant 0 : i32
    %242 = arith.cmpi ne, %241, %c0_i32_100 : i32
    scf.if %242 {
      %c0_101 = arith.constant 0 : index
      %c0_102 = arith.constant 0 : index
      %243 = vector.load %arg14[%c0_101, %c0_102] : memref<1x32xf32, #tpu.memory_space<vmem>>, vector<1x32xf32>
      %c0_103 = arith.constant 0 : index
      %c0_104 = arith.constant 0 : index
      %244 = vector.load %arg15[%c0_103, %c0_104] : memref<1x32xf32, #tpu.memory_space<vmem>>, vector<1x32xf32>
      %cst_105 = arith.constant dense<0.000000e+00> : vector<16xf32>
      %245 = vector.multi_reduction <add>, %238, %cst_105 [1] : vector<16x32xf32> to vector<16xf32>
      %246 = vector.shape_cast %245 : vector<16xf32> to vector<16x1xf32>
      %cst_106 = arith.constant 3.200000e+01 : f32
      %247 = vector.broadcast %cst_106 : f32 to vector<16x1xf32>
      %248 = arith.divf %246, %247 : vector<16x1xf32>
      %249 = vector.broadcast %248 : vector<16x1xf32> to vector<16x32xf32>
      %250 = arith.subf %238, %249 : vector<16x32xf32>
      %251 = arith.mulf %250, %250 : vector<16x32xf32>
      %cst_107 = arith.constant dense<0.000000e+00> : vector<16xf32>
      %252 = vector.multi_reduction <add>, %251, %cst_107 [1] : vector<16x32xf32> to vector<16xf32>
      %253 = vector.shape_cast %252 : vector<16xf32> to vector<16x1xf32>
      %cst_108 = arith.constant 3.200000e+01 : f32
      %254 = vector.broadcast %cst_108 : f32 to vector<16x1xf32>
      %255 = arith.divf %253, %254 : vector<16x1xf32>
      %256 = vector.broadcast %248 : vector<16x1xf32> to vector<16x32xf32>
      %257 = arith.subf %238, %256 : vector<16x32xf32>
      %cst_109 = arith.constant 9.99999974E-6 : f32
      %258 = vector.broadcast %cst_109 : f32 to vector<16x1xf32>
      %259 = arith.addf %255, %258 : vector<16x1xf32>
      %260 = math.rsqrt %259 : vector<16x1xf32>
      %261 = vector.broadcast %260 : vector<16x1xf32> to vector<16x32xf32>
      %262 = arith.mulf %257, %261 : vector<16x32xf32>
      %263 = vector.broadcast %243 : vector<1x32xf32> to vector<16x32xf32>
      %264 = arith.mulf %262, %263 : vector<16x32xf32>
      %265 = vector.broadcast %244 : vector<1x32xf32> to vector<16x32xf32>
      %266 = arith.addf %264, %265 : vector<16x32xf32>
      %c0_110 = arith.constant 0 : index
      %c0_111 = arith.constant 0 : index
      %c0_112 = arith.constant 0 : index
      %267 = vector.load %arg16[%c0_110, %c0_111, %c0_112] : memref<1x16x32xf32, #tpu.memory_space<vmem>>, vector<1x16x32xf32>
      %268 = vector.shape_cast %267 : vector<1x16x32xf32> to vector<16x32xf32>
      %269 = vector.shape_cast %266 : vector<16x32xf32> to vector<1x16x32xf32>
      tpu.vector_store %arg16[%c0_110, %c0_111, %c0_112], %269 {strides = array<i32>} : memref<1x16x32xf32, #tpu.memory_space<vmem>>, vector<1x16x32xf32>,
    } else {
    }
    return
  }
  func.func @transform_0(%arg0: i32, %arg1: i32) -> (i32, i32, i32) {
    %c0_i32 = arith.constant 0 : i32
    %c0_i32_0 = arith.constant 0 : i32
    %c0_i32_1 = arith.constant 0 : i32
    return %arg0, %c0_i32, %c0_i32_0 : i32, i32, i32
  }
  func.func @transform_1(%arg0: i32, %arg1: i32) -> (i32, i32, i32) {
    %c0_i32 = arith.constant 0 : i32
    %c0_i32_0 = arith.constant 0 : i32
    %c0_i32_1 = arith.constant 0 : i32
    return %arg1, %c0_i32, %c0_i32_0 : i32, i32, i32
  }
  func.func @transform_2(%arg0: i32, %arg1: i32) -> (i32, i32, i32) {
    %c0_i32 = arith.constant 0 : i32
    %c0_i32_0 = arith.constant 0 : i32
    %c0_i32_1 = arith.constant 0 : i32
    return %arg1, %c0_i32, %c0_i32_0 : i32, i32, i32
  }
  func.func @transform_3(%arg0: i32, %arg1: i32) -> (i32, i32, i32) {
    %c0_i32 = arith.constant 0 : i32
    %c0_i32_0 = arith.constant 0 : i32
    %c0_i32_1 = arith.constant 0 : i32
    return %arg1, %c0_i32, %c0_i32_0 : i32, i32, i32
  }
  func.func @transform_4(%arg0: i32, %arg1: i32) -> (i32, i32, i32) {
    %c0_i32 = arith.constant 0 : i32
    %c0_i32_0 = arith.constant 0 : i32
    %c0_i32_1 = arith.constant 0 : i32
    return %arg1, %c0_i32, %c0_i32_0 : i32, i32, i32
  }
  func.func @transform_5(%arg0: i32, %arg1: i32) -> (i32, i32, i32) {
    %c0_i32 = arith.constant 0 : i32
    %c0_i32_0 = arith.constant 0 : i32
    %c0_i32_1 = arith.constant 0 : i32
    return %arg1, %c0_i32, %c0_i32_0 : i32, i32, i32
  }
  func.func @transform_6(%arg0: i32, %arg1: i32) -> (i32, i32, i32) {
    %c0_i32 = arith.constant 0 : i32
    %c0_i32_0 = arith.constant 0 : i32
    %c0_i32_1 = arith.constant 0 : i32
    return %arg1, %c0_i32, %c0_i32_0 : i32, i32, i32
  }
  func.func @transform_7(%arg0: i32, %arg1: i32) -> (i32, i32, i32) {
    %c0_i32 = arith.constant 0 : i32
    %c0_i32_0 = arith.constant 0 : i32
    %c0_i32_1 = arith.constant 0 : i32
    return %arg1, %c0_i32, %c0_i32_0 : i32, i32, i32
  }
  func.func @transform_8(%arg0: i32, %arg1: i32) -> (i32, i32, i32) {
    %c0_i32 = arith.constant 0 : i32
    %c0_i32_0 = arith.constant 0 : i32
    %c0_i32_1 = arith.constant 0 : i32
    return %arg1, %c0_i32, %c0_i32_0 : i32, i32, i32
  }
  func.func @transform_9(%arg0: i32, %arg1: i32) -> (i32, i32, i32) {
    %c0_i32 = arith.constant 0 : i32
    %c0_i32_0 = arith.constant 0 : i32
    %c0_i32_1 = arith.constant 0 : i32
    return %arg1, %c0_i32, %c0_i32_0 : i32, i32, i32
  }
  func.func @transform_10(%arg0: i32, %arg1: i32) -> (i32, i32, i32) {
    %c0_i32 = arith.constant 0 : i32
    %c0_i32_0 = arith.constant 0 : i32
    %c0_i32_1 = arith.constant 0 : i32
    return %arg1, %c0_i32, %c0_i32_0 : i32, i32, i32
  }
  func.func @transform_11(%arg0: i32, %arg1: i32) -> (i32, i32, i32) {
    %c0_i32 = arith.constant 0 : i32
    %c0_i32_0 = arith.constant 0 : i32
    %c0_i32_1 = arith.constant 0 : i32
    return %arg1, %c0_i32, %c0_i32_0 : i32, i32, i32
  }
  func.func @transform_12(%arg0: i32, %arg1: i32) -> (i32, i32) {
    %c0_i32 = arith.constant 0 : i32
    %c0_i32_0 = arith.constant 0 : i32
    %c0_i32_1 = arith.constant 0 : i32
    return %c0_i32, %c0_i32_0 : i32, i32
  }
  func.func @transform_13(%arg0: i32, %arg1: i32) -> (i32, i32) {
    %c0_i32 = arith.constant 0 : i32
    %c0_i32_0 = arith.constant 0 : i32
    %c0_i32_1 = arith.constant 0 : i32
    return %c0_i32, %c0_i32_0 : i32, i32
  }
  func.func @transform_14(%arg0: i32, %arg1: i32) -> (i32, i32, i32) {
    %c0_i32 = arith.constant 0 : i32
    %c0_i32_0 = arith.constant 0 : i32
    %c0_i32_1 = arith.constant 0 : i32
    return %arg0, %c0_i32, %c0_i32_0 : i32, i32, i32
  }
}

</mosaic_0001>

<llo_original>
// kernel: tpu_custom_call.1
$region0: #{tpu_custom_call.1}
  #allocation0 [shape = 'u32[]', space=smem, size = 0x4, offset = 0x4, fixed_abs, tag = 'smem constant byte address 0x4 - core index']
  #allocation1 [shape = 'u32[144,128]{1,0:T(1,128)}', space=vmem, size = 0x12000, scoped, tag = 'internal scratch']
  #allocation2 [shape = 'f32[16,32]{1,0:T(8,128)}', space=vmem, size = 0x2000, scoped, tag = 'scratch operand']
  #allocation3 [shape = 'bf16[16,32]{1,0:T(8,128)(2,1)}', space=vmem, size = 0x1000, scoped, tag = 'scratch operand']
  %s0 = inlined_call_operand.hbm [shape: f32[1,16,32], index: 0, kind: input, shape index: {}]
  %s1 = inlined_call_operand.hbm [shape: f32[2,1,32], index: 1, kind: input, shape index: {}]
  %s2 = inlined_call_operand.vmem [shape: f32[2,1,32], index: 2, kind: input, shape index: {}]
  %s3 = inlined_call_operand.vmem [shape: bf16[2,32,96], index: 3, kind: input, shape index: {}]
  %s4 = inlined_call_operand.vmem [shape: bf16[2,32,32], index: 4, kind: input, shape index: {}]
  %s5 = inlined_call_operand.vmem [shape: f32[2,1,32], index: 5, kind: input, shape index: {}]
  %s6 = inlined_call_operand.vmem [shape: f32[2,1,32], index: 6, kind: input, shape index: {}]
  %s7 = inlined_call_operand.vmem [shape: f32[2,1,32], index: 7, kind: input, shape index: {}]
  %s8 = inlined_call_operand.vmem [shape: bf16[2,32,64], index: 8, kind: input, shape index: {}]
  %s9 = inlined_call_operand.vmem [shape: f32[2,1,64], index: 9, kind: input, shape index: {}]
  %s10 = inlined_call_operand.vmem [shape: bf16[2,64,32], index: 10, kind: input, shape index: {}]
  %s11 = inlined_call_operand.vmem [shape: f32[2,1,32], index: 11, kind: input, shape index: {}]
  %s12 = inlined_call_operand.vmem [shape: f32[1,32], index: 12, kind: input, shape index: {}]
  %s13 = inlined_call_operand.vmem [shape: f32[1,32], index: 13, kind: input, shape index: {}]
  %s14 = inlined_call_operand.hbm [shape: f32[1,16,32], index: 14, kind: output, shape index: {}]
  %s15 = sld [smem:[#allocation0]]
  $region105: #{tpu_custom_call.1} parent=0
    _
  %s17 = ssub.s32 1, %s15
  %s18 = scalar_select 0, %s17, %s15
  $region1: #{tpu_custom_call.1} parent=0
    #allocation4 [shape = 'u8[8192]{0}', space=vmem, size = 0x2000, scoped, tag = 'input window, operand 0, single buffered']
    #allocation5 [shape = 's32[2]{0}', space=sflag, size = 0x8, scoped, tag = 'scoped memory for tpu_custom_call.1']
    #allocation6 [shape = 's32[2]{0}', space=sflag, size = 0x8, scoped, tag = 'scoped memory for tpu_custom_call.1']
    #allocation7 [shape = 'u8[1024]{0}', space=vmem, size = 0x400, scoped, tag = 'input window, operand 1']
    #allocation8 [shape = 's32[2]{0}', space=sflag, size = 0x8, scoped, tag = 'scoped memory for tpu_custom_call.1']
    #allocation9 [shape = 'u8[8192]{0}', space=vmem, size = 0x2000, scoped, tag = 'output window, operand 0, single buffered']
    %19 = vsyncpa [#allocation5], 0
    %20 = vsyncpa [#allocation8], 0
    %s21 = scalar_lea.sflag [#allocation8], 1
    %22 = vsyncpa %s21, 0
    %23 = vsyncpa [#allocation6], 0
    loop: start=0, step=1, limit=4
    $region2: #{tpu_custom_call.1} parent=1 // loop_pre_header
      _
    $region3: #{tpu_custom_call.1} parent=1 // loop_header
      %s25 = sphi 0, %s29
      %p26 = scmp.ge.s32.totalorder %s25, 4
      %s32 = sphi 0, %s44
      %s33 = sphi 0, %s40
      %s34 = sphi 0, %s32
      %s35 = sphi 0, %s33
      %s36 = sphi 0, %s34
      %s37 = sphi 0, %s35
      %s47 = sphi 0, %s49
      %s50 = sphi 0, %s47
      %s51 = sphi 0, %s50
      %s67 = sphi 0, %s51
      %s73 = sphi 0, %s75
      %s76 = sphi 0, %s73
      %s77 = sphi 0, %s76
      %s93 = sphi 0, %s77
      %s99 = sphi 0, %s101
      %s102 = sphi 0, %s99
      %s103 = sphi 0, %s102
      %s119 = sphi 0, %s103
      %s125 = sphi 0, %s127
      %s128 = sphi 0, %s125
      %s129 = sphi 0, %s128
      %s145 = sphi 0, %s129
      %s151 = sphi 0, %s153
      %s154 = sphi 0, %s151
      %s155 = sphi 0, %s154
      %s171 = sphi 0, %s155
      %s177 = sphi 0, %s179
      %s180 = sphi 0, %s177
      %s181 = sphi 0, %s180
      %s197 = sphi 0, %s181
      %s203 = sphi 0, %s205
      %s206 = sphi 0, %s203
      %s207 = sphi 0, %s206
      %s223 = sphi 0, %s207
      %s229 = sphi 0, %s231
      %s232 = sphi 0, %s229
      %s233 = sphi 0, %s232
      %s249 = sphi 0, %s233
      %s255 = sphi 0, %s257
      %s258 = sphi 0, %s255
      %s259 = sphi 0, %s258
      %s275 = sphi 0, %s259
      %s281 = sphi 0, %s283
      %s284 = sphi 0, %s281
      %s285 = sphi 0, %s284
      %s301 = sphi 0, %s285
      %s307 = sphi 0, %s309
      %s310 = sphi 0, %s307
      %s311 = sphi 0, %s310
      %s327 = sphi 0, %s311
      %s333 = sphi 0, %s335
      %s336 = sphi 0, %s333
      %s337 = sphi 0, %s336
      %s353 = sphi 0, %s337
      %s357 = sphi 0, %s357
      %s359 = sphi 0, %s357
      %s360 = sphi 0, %s359
      %s374 = sphi 0, %s360
      %s378 = sphi 0, %s378
      %s380 = sphi 0, %s378
      %s381 = sphi 0, %s380
      %s395 = sphi 0, %s381
      %s401 = sphi 0, %s403
      %s404 = sphi 0, %s401
      %s405 = sphi 0, %s404
      %s421 = sphi 0, %s405
    $region4: #{tpu_custom_call.1} parent=1 // loop_header_branch
      %28 = sbr.rel (%p26) target = $region8
    $region5: #{tpu_custom_call.1} parent=1 // loop_body
      %s30 = ssub.s32 %s25, 1
      %s31 = ssub.s32 %s25, 2
      %s38 = sadd.s32 1, %s33
      %p39 = scmp.ge.s32.totalorder %s38, 2
      %s40 = scalar_select %p39, 0, %s38
      %s41 = sadd.s32 1, %s32
      %s42 = scalar_select %p39, %s41, %s32
      %p43 = scmp.ge.s32.totalorder %s42, 1
      %s44 = scalar_select %p43, 0, %s42
      %s45 = ssub.s32 %s32, %s44
      %p46 = scmp.eq.s32.totalorder %s45, 0
      %s48 = sadd.s32 %s47, 1
      %s49 = scalar_select %p46, %s47, %s48
      %p52 = pneg %p46
      %p53 = scmp.eq.s32.totalorder %s25, 1
      %p54 = por %p52, %p53
      %p55 = scmp.ne.s32.totalorder %s47, %s50
      %p56 = scmp.eq.s32.totalorder %s25, 0
      %p57 = por %p55, %p56
      %p58 = scmp.ne.s32.totalorder %s47, %s50
      %p59 = scmp.eq.s32.totalorder %s30, 1
      %p60 = por %p58, %p59
      %p61 = scmp.ne.s32.totalorder %s50, %s51
      %p62 = scmp.eq.s32.totalorder %s30, 0
      %p63 = por %p61, %p62
      %p64 = scmp.ne.s32.totalorder %s50, %s51
      %p65 = scmp.eq.s32.totalorder %s31, 1
      %p66 = por %p64, %p65
      %p68 = scmp.ne.s32.totalorder %s51, %s67
      %p69 = scmp.eq.s32.totalorder %s31, 0
      %p70 = por %p68, %p69
      %s71 = ssub.s32 %s33, %s40
      %p72 = scmp.eq.s32.totalorder %s71, 0
      %s74 = sadd.s32 %s73, 1
      %s75 = scalar_select %p72, %s73, %s74
      %p78 = pneg %p72
      %p79 = scmp.eq.s32.totalorder %s25, 1
      %p80 = por %p78, %p79
      %p81 = scmp.ne.s32.totalorder %s73, %s76
      %p82 = scmp.eq.s32.totalorder %s25, 0
      %p83 = por %p81, %p82
      %p84 = scmp.ne.s32.totalorder %s73, %s76
      %p85 = scmp.eq.s32.totalorder %s30, 1
      %p86 = por %p84, %p85
      %p87 = scmp.ne.s32.totalorder %s76, %s77
      %p88 = scmp.eq.s32.totalorder %s30, 0
      %p89 = por %p87, %p88
      %p90 = scmp.ne.s32.totalorder %s76, %s77
      %p91 = scmp.eq.s32.totalorder %s31, 1
      %p92 = por %p90, %p91
      %p94 = scmp.ne.s32.totalorder %s77, %s93
      %p95 = scmp.eq.s32.totalorder %s31, 0
      %p96 = por %p94, %p95
      %s97 = ssub.s32 %s33, %s40
      %p98 = scmp.eq.s32.totalorder %s97, 0
      %s100 = sadd.s32 %s99, 1
      %s101 = scalar_select %p98, %s99, %s100
      %p104 = pneg %p98
      %p105 = scmp.eq.s32.totalorder %s25, 1
      %p106 = por %p104, %p105
      %p107 = scmp.ne.s32.totalorder %s99, %s102
      %p108 = scmp.eq.s32.totalorder %s25, 0
      %p109 = por %p107, %p108
      %p110 = scmp.ne.s32.totalorder %s99, %s102
      %p111 = scmp.eq.s32.totalorder %s30, 1
      %p112 = por %p110, %p111
      %p113 = scmp.ne.s32.totalorder %s102, %s103
      %p114 = scmp.eq.s32.totalorder %s30, 0
      %p115 = por %p113, %p114
      %p116 = scmp.ne.s32.totalorder %s102, %s103
      %p117 = scmp.eq.s32.totalorder %s31, 1
      %p118 = por %p116, %p117
      %p120 = scmp.ne.s32.totalorder %s103, %s119
      %p121 = scmp.eq.s32.totalorder %s31, 0
      %p122 = por %p120, %p121
      %s123 = ssub.s32 %s33, %s40
      %p124 = scmp.eq.s32.totalorder %s123, 0
      %s126 = sadd.s32 %s125, 1
      %s127 = scalar_select %p124, %s125, %s126
      %p130 = pneg %p124
      %p131 = scmp.eq.s32.totalorder %s25, 1
      %p132 = por %p130, %p131
      %p133 = scmp.ne.s32.totalorder %s125, %s128
      %p134 = scmp.eq.s32.totalorder %s25, 0
      %p135 = por %p133, %p134
      %p136 = scmp.ne.s32.totalorder %s125, %s128
      %p137 = scmp.eq.s32.totalorder %s30, 1
      %p138 = por %p136, %p137
      %p139 = scmp.ne.s32.totalorder %s128, %s129
      %p140 = scmp.eq.s32.totalorder %s30, 0
      %p141 = por %p139, %p140
      %p142 = scmp.ne.s32.totalorder %s128, %s129
      %p143 = scmp.eq.s32.totalorder %s31, 1
      %p144 = por %p142, %p143
      %p146 = scmp.ne.s32.totalorder %s129, %s145
      %p147 = scmp.eq.s32.totalorder %s31, 0
      %p148 = por %p146, %p147
      %s149 = ssub.s32 %s33, %s40
      %p150 = scmp.eq.s32.totalorder %s149, 0
      %s152 = sadd.s32 %s151, 1
      %s153 = scalar_select %p150, %s151, %s152
      %p156 = pneg %p150
      %p157 = scmp.eq.s32.totalorder %s25, 1
      %p158 = por %p156, %p157
      %p159 = scmp.ne.s32.totalorder %s151, %s154
      %p160 = scmp.eq.s32.totalorder %s25, 0
      %p161 = por %p159, %p160
      %p162 = scmp.ne.s32.totalorder %s151, %s154
      %p163 = scmp.eq.s32.totalorder %s30, 1
      %p164 = por %p162, %p163
      %p165 = scmp.ne.s32.totalorder %s154, %s155
      %p166 = scmp.eq.s32.totalorder %s30, 0
      %p167 = por %p165, %p166
      %p168 = scmp.ne.s32.totalorder %s154, %s155
      %p169 = scmp.eq.s32.totalorder %s31, 1
      %p170 = por %p168, %p169
      %p172 = scmp.ne.s32.totalorder %s155, %s171
      %p173 = scmp.eq.s32.totalorder %s31, 0
      %p174 = por %p172, %p173
      %s175 = ssub.s32 %s33, %s40
      %p176 = scmp.eq.s32.totalorder %s175, 0
      %s178 = sadd.s32 %s177, 1
      %s179 = scalar_select %p176, %s177, %s178
      %p182 = pneg %p176
      %p183 = scmp.eq.s32.totalorder %s25, 1
      %p184 = por %p182, %p183
      %p185 = scmp.ne.s32.totalorder %s177, %s180
      %p186 = scmp.eq.s32.totalorder %s25, 0
      %p187 = por %p185, %p186
      %p188 = scmp.ne.s32.totalorder %s177, %s180
      %p189 = scmp.eq.s32.totalorder %s30, 1
      %p190 = por %p188, %p189
      %p191 = scmp.ne.s32.totalorder %s180, %s181
      %p192 = scmp.eq.s32.totalorder %s30, 0
      %p193 = por %p191, %p192
      %p194 = scmp.ne.s32.totalorder %s180, %s181
      %p195 = scmp.eq.s32.totalorder %s31, 1
      %p196 = por %p194, %p195
      %p198 = scmp.ne.s32.totalorder %s181, %s197
      %p199 = scmp.eq.s32.totalorder %s31, 0
      %p200 = por %p198, %p199
      %s201 = ssub.s32 %s33, %s40
      %p202 = scmp.eq.s32.totalorder %s201, 0
      %s204 = sadd.s32 %s203, 1
      %s205 = scalar_select %p202, %s203, %s204
      %p208 = pneg %p202
      %p209 = scmp.eq.s32.totalorder %s25, 1
      %p210 = por %p208, %p209
      %p211 = scmp.ne.s32.totalorder %s203, %s206
      %p212 = scmp.eq.s32.totalorder %s25, 0
      %p213 = por %p211, %p212
      %p214 = scmp.ne.s32.totalorder %s203, %s206
      %p215 = scmp.eq.s32.totalorder %s30, 1
      %p216 = por %p214, %p215
      %p217 = scmp.ne.s32.totalorder %s206, %s207
      %p218 = scmp.eq.s32.totalorder %s30, 0
      %p219 = por %p217, %p218
      %p220 = scmp.ne.s32.totalorder %s206, %s207
      %p221 = scmp.eq.s32.totalorder %s31, 1
      %p222 = por %p220, %p221
      %p224 = scmp.ne.s32.totalorder %s207, %s223
      %p225 = scmp.eq.s32.totalorder %s31, 0
      %p226 = por %p224, %p225
      %s227 = ssub.s32 %s33, %s40
      %p228 = scmp.eq.s32.totalorder %s227, 0
      %s230 = sadd.s32 %s229, 1
      %s231 = scalar_select %p228, %s229, %s230
      %p234 = pneg %p228
      %p235 = scmp.eq.s32.totalorder %s25, 1
      %p236 = por %p234, %p235
      %p237 = scmp.ne.s32.totalorder %s229, %s232
      %p238 = scmp.eq.s32.totalorder %s25, 0
      %p239 = por %p237, %p238
      %p240 = scmp.ne.s32.totalorder %s229, %s232
      %p241 = scmp.eq.s32.totalorder %s30, 1
      %p242 = por %p240, %p241
      %p243 = scmp.ne.s32.totalorder %s232, %s233
      %p244 = scmp.eq.s32.totalorder %s30, 0
      %p245 = por %p243, %p244
      %p246 = scmp.ne.s32.totalorder %s232, %s233
      %p247 = scmp.eq.s32.totalorder %s31, 1
      %p248 = por %p246, %p247
      %p250 = scmp.ne.s32.totalorder %s233, %s249
      %p251 = scmp.eq.s32.totalorder %s31, 0
      %p252 = por %p250, %p251
      %s253 = ssub.s32 %s33, %s40
      %p254 = scmp.eq.s32.totalorder %s253, 0
      %s256 = sadd.s32 %s255, 1
      %s257 = scalar_select %p254, %s255, %s256
      %p260 = pneg %p254
      %p261 = scmp.eq.s32.totalorder %s25, 1
      %p262 = por %p260, %p261
      %p263 = scmp.ne.s32.totalorder %s255, %s258
      %p264 = scmp.eq.s32.totalorder %s25, 0
      %p265 = por %p263, %p264
      %p266 = scmp.ne.s32.totalorder %s255, %s258
      %p267 = scmp.eq.s32.totalorder %s30, 1
      %p268 = por %p266, %p267
      %p269 = scmp.ne.s32.totalorder %s258, %s259
      %p270 = scmp.eq.s32.totalorder %s30, 0
      %p271 = por %p269, %p270
      %p272 = scmp.ne.s32.totalorder %s258, %s259
      %p273 = scmp.eq.s32.totalorder %s31, 1
      %p274 = por %p272, %p273
      %p276 = scmp.ne.s32.totalorder %s259, %s275
      %p277 = scmp.eq.s32.totalorder %s31, 0
      %p278 = por %p276, %p277
      %s279 = ssub.s32 %s33, %s40
      %p280 = scmp.eq.s32.totalorder %s279, 0
      %s282 = sadd.s32 %s281, 1
      %s283 = scalar_select %p280, %s281, %s282
      %p286 = pneg %p280
      %p287 = scmp.eq.s32.totalorder %s25, 1
      %p288 = por %p286, %p287
      %p289 = scmp.ne.s32.totalorder %s281, %s284
      %p290 = scmp.eq.s32.totalorder %s25, 0
      %p291 = por %p289, %p290
      %p292 = scmp.ne.s32.totalorder %s281, %s284
      %p293 = scmp.eq.s32.totalorder %s30, 1
      %p294 = por %p292, %p293
      %p295 = scmp.ne.s32.totalorder %s284, %s285
      %p296 = scmp.eq.s32.totalorder %s30, 0
      %p297 = por %p295, %p296
      %p298 = scmp.ne.s32.totalorder %s284, %s285
      %p299 = scmp.eq.s32.totalorder %s31, 1
      %p300 = por %p298, %p299
      %p302 = scmp.ne.s32.totalorder %s285, %s301
      %p303 = scmp.eq.s32.totalorder %s31, 0
      %p304 = por %p302, %p303
      %s305 = ssub.s32 %s33, %s40
      %p306 = scmp.eq.s32.totalorder %s305, 0
      %s308 = sadd.s32 %s307, 1
      %s309 = scalar_select %p306, %s307, %s308
      %p312 = pneg %p306
      %p313 = scmp.eq.s32.totalorder %s25, 1
      %p314 = por %p312, %p313
      %p315 = scmp.ne.s32.totalorder %s307, %s310
      %p316 = scmp.eq.s32.totalorder %s25, 0
      %p317 = por %p315, %p316
      %p318 = scmp.ne.s32.totalorder %s307, %s310
      %p319 = scmp.eq.s32.totalorder %s30, 1
      %p320 = por %p318, %p319
      %p321 = scmp.ne.s32.totalorder %s310, %s311
      %p322 = scmp.eq.s32.totalorder %s30, 0
      %p323 = por %p321, %p322
      %p324 = scmp.ne.s32.totalorder %s310, %s311
      %p325 = scmp.eq.s32.totalorder %s31, 1
      %p326 = por %p324, %p325
      %p328 = scmp.ne.s32.totalorder %s311, %s327
      %p329 = scmp.eq.s32.totalorder %s31, 0
      %p330 = por %p328, %p329
      %s331 = ssub.s32 %s33, %s40
      %p332 = scmp.eq.s32.totalorder %s331, 0
      %s334 = sadd.s32 %s333, 1
      %s335 = scalar_select %p332, %s333, %s334
      %p338 = pneg %p332
      %p339 = scmp.eq.s32.totalorder %s25, 1
      %p340 = por %p338, %p339
      %p341 = scmp.ne.s32.totalorder %s333, %s336
      %p342 = scmp.eq.s32.totalorder %s25, 0
      %p343 = por %p341, %p342
      %p344 = scmp.ne.s32.totalorder %s333, %s336
      %p345 = scmp.eq.s32.totalorder %s30, 1
      %p346 = por %p344, %p345
      %p347 = scmp.ne.s32.totalorder %s336, %s337
      %p348 = scmp.eq.s32.totalorder %s30, 0
      %p349 = por %p347, %p348
      %p350 = scmp.ne.s32.totalorder %s336, %s337
      %p351 = scmp.eq.s32.totalorder %s31, 1
      %p352 = por %p350, %p351
      %p354 = scmp.ne.s32.totalorder %s337, %s353
      %p355 = scmp.eq.s32.totalorder %s31, 0
      %p356 = por %p354, %p355
      %s358 = sadd.s32 %s357, 1
      %p361 = scmp.eq.s32.totalorder %s25, 1
      %p362 = scmp.ne.s32.totalorder %s357, %s359
      %p363 = scmp.eq.s32.totalorder %s25, 0
      %p364 = por %p362, %p363
      %p365 = scmp.ne.s32.totalorder %s357, %s359
      %p366 = scmp.eq.s32.totalorder %s30, 1
      %p367 = por %p365, %p366
      %p368 = scmp.ne.s32.totalorder %s359, %s360
      %p369 = scmp.eq.s32.totalorder %s30, 0
      %p370 = por %p368, %p369
      %p371 = scmp.ne.s32.totalorder %s359, %s360
      %p372 = scmp.eq.s32.totalorder %s31, 1
      %p373 = por %p371, %p372
      %p375 = scmp.ne.s32.totalorder %s360, %s374
      %p376 = scmp.eq.s32.totalorder %s31, 0
      %p377 = por %p375, %p376
      %s379 = sadd.s32 %s378, 1
      %p382 = scmp.eq.s32.totalorder %s25, 1
      %p383 = scmp.ne.s32.totalorder %s378, %s380
      %p384 = scmp.eq.s32.totalorder %s25, 0
      %p385 = por %p383, %p384
      %p386 = scmp.ne.s32.totalorder %s378, %s380
      %p387 = scmp.eq.s32.totalorder %s30, 1
      %p388 = por %p386, %p387
      %p389 = scmp.ne.s32.totalorder %s380, %s381
      %p390 = scmp.eq.s32.totalorder %s30, 0
      %p391 = por %p389, %p390
      %p392 = scmp.ne.s32.totalorder %s380, %s381
      %p393 = scmp.eq.s32.totalorder %s31, 1
      %p394 = por %p392, %p393
      %p396 = scmp.ne.s32.totalorder %s381, %s395
      %p397 = scmp.eq.s32.totalorder %s31, 0
      %p398 = por %p396, %p397
      %s399 = ssub.s32 %s32, %s44
      %p400 = scmp.eq.s32.totalorder %s399, 0
      %s402 = sadd.s32 %s401, 1
      %s403 = scalar_select %p400, %s401, %s402
      %p406 = pneg %p400
      %p407 = scmp.eq.s32.totalorder %s25, 1
      %p408 = por %p406, %p407
      %p409 = scmp.ne.s32.totalorder %s401, %s404
      %p410 = scmp.eq.s32.totalorder %s25, 0
      %p411 = por %p409, %p410
      %p412 = scmp.ne.s32.totalorder %s401, %s404
      %p413 = scmp.eq.s32.totalorder %s30, 1
      %p414 = por %p412, %p413
      %p415 = scmp.ne.s32.totalorder %s404, %s405
      %p416 = scmp.eq.s32.totalorder %s30, 0
      %p417 = por %p415, %p416
      %p418 = scmp.ne.s32.totalorder %s404, %s405
      %p419 = scmp.eq.s32.totalorder %s31, 1
      %p420 = por %p418, %p419
      %p422 = scmp.ne.s32.totalorder %s405, %s421
      %p423 = scmp.eq.s32.totalorder %s31, 0
      %p424 = por %p422, %p423
      %p425 = scmp.le.s32.totalorder 1, %s25
      %p426 = scmp.lt.s32.totalorder %s25, 3
      %p427 = pnand %p425, %p426
      %p428 = pneg %p427
      // Predicated region
      $region9: #{tpu_custom_call.1} parent=5 // pred_check
        _
      $region10: #{tpu_custom_call.1} parent=5 // pred_check_branch
        %430 = sbr.rel (%p427) target = $region12
      $region11: #{tpu_custom_call.1} parent=5 // pred_region
        %s431 = ssub.s32 %s25, 1
        // Predicated region
        $region13: #{tpu_custom_call.1} parent=11 // pred_check
          %p432 = pneg %p63
        $region14: #{tpu_custom_call.1} parent=11 // pred_check_branch
          %434 = sbr.rel (%p432) target = $region16
        $region15: #{tpu_custom_call.1} parent=11 // pred_region
          %s436 = ssub.s32 256, 256
          %437 = vsyncadd [#allocation5], %s436
          %s438 = smul.addr %s34, 2
          %s439 = smul.addr %s438, 128
          %s440 = scalar_lea.hbm %s0, %s439
          %s441 = sshll.u32 [#allocation4], 4
          %s442 = int_to_ptr.vmem [resolvable:$true] %s441
          %447 = dma.hbm_to_vmem [thread:$0]  %s440, 256, %s442, [#allocation5], 128, 128, 8
        $region16: #{tpu_custom_call.1} parent=11 // pred_fallthru
          _
        // Predicated region
        $region17: #{tpu_custom_call.1} parent=11 // pred_check
          %p448 = pneg %p370
        $region18: #{tpu_custom_call.1} parent=11 // pred_check_branch
          %450 = sbr.rel (%p448) target = $region20
        $region19: #{tpu_custom_call.1} parent=11 // pred_region
          _
        $region20: #{tpu_custom_call.1} parent=11 // pred_fallthru
          _
        // Predicated region
        $region21: #{tpu_custom_call.1} parent=11 // pred_check
          %p451 = pneg %p391
        $region22: #{tpu_custom_call.1} parent=11 // pred_check_branch
          %453 = sbr.rel (%p451) target = $region24
        $region23: #{tpu_custom_call.1} parent=11 // pred_region
          _
        $region24: #{tpu_custom_call.1} parent=11 // pred_fallthru
          _
      $region12: #{tpu_custom_call.1} parent=5 // pred_fallthru
        _
      %p454 = scmp.lt.s32.totalorder %s25, 2
      // Predicated region
      $region25: #{tpu_custom_call.1} parent=5 // pred_check
        %p455 = pneg %p454
      $region26: #{tpu_custom_call.1} parent=5 // pred_check_branch
        %457 = sbr.rel (%p455) target = $region28
      $region27: #{tpu_custom_call.1} parent=5 // pred_region
        // Predicated region
        $region29: #{tpu_custom_call.1} parent=27 // pred_check
          %p458 = pneg %p83
        $region30: #{tpu_custom_call.1} parent=27 // pred_check_branch
          %460 = sbr.rel (%p458) target = $region32
        $region31: #{tpu_custom_call.1} parent=27 // pred_region
          %s461 = sand.u32 %s73, 1
          %s462 = scalar_lea.sflag [#allocation8], %s461
          %s463 = sand.u32 %s73, 1
          %s464 = scalar_lea.vmem [#allocation7], %s463
          %s466 = ssub.s32 16, 16
          %467 = vsyncadd %s462, %s466
          %s468 = smul.addr %s33, 16
          %s469 = scalar_lea.hbm %s1, %s468
          %s471 = sshll.u32 %s464, 4
          %s472 = int_to_ptr.vmem [resolvable:$true] %s471
          %474 = dma.hbm_to_vmem [thread:$0]  %s469, 16, %s472, %s462
        $region32: #{tpu_custom_call.1} parent=27 // pred_fallthru
          _
        // Predicated region
        $region33: #{tpu_custom_call.1} parent=27 // pred_check
          %p475 = pneg %p109
        $region34: #{tpu_custom_call.1} parent=27 // pred_check_branch
          %477 = sbr.rel (%p475) target = $region36
        $region35: #{tpu_custom_call.1} parent=27 // pred_region
          %p478 = scmp.lt.s32.totalorder %s33, 1
          %s479 = scalar_select %p478, %s33, 1
          %s480 = scalar_lea.vmem %s2, %s479
        $region36: #{tpu_custom_call.1} parent=27 // pred_fallthru
          _
        // Predicated region
        $region37: #{tpu_custom_call.1} parent=27 // pred_check
          %p481 = pneg %p135
        $region38: #{tpu_custom_call.1} parent=27 // pred_check_branch
          %483 = sbr.rel (%p481) target = $region40
        $region39: #{tpu_custom_call.1} parent=27 // pred_region
          %p484 = scmp.lt.s32.totalorder %s33, 1
          %s485 = scalar_select %p484, %s33, 1
          %s486 = smul.addr %s485, 4
          %s487 = smul.addr %s486, 4
          %s488 = scalar_lea.vmem %s3, %s487
        $region40: #{tpu_custom_call.1} parent=27 // pred_fallthru
          _
        // Predicated region
        $region41: #{tpu_custom_call.1} parent=27 // pred_check
          %p489 = pneg %p161
        $region42: #{tpu_custom_call.1} parent=27 // pred_check_branch
          %491 = sbr.rel (%p489) target = $region44
        $region43: #{tpu_custom_call.1} parent=27 // pred_region
          %p492 = scmp.lt.s32.totalorder %s33, 1
          %s493 = scalar_select %p492, %s33, 1
          %s494 = smul.addr %s493, 4
          %s495 = smul.addr %s494, 4
          %s496 = scalar_lea.vmem %s4, %s495
        $region44: #{tpu_custom_call.1} parent=27 // pred_fallthru
          _
        // Predicated region
        $region45: #{tpu_custom_call.1} parent=27 // pred_check
          %p497 = pneg %p187
        $region46: #{tpu_custom_call.1} parent=27 // pred_check_branch
          %499 = sbr.rel (%p497) target = $region48
        $region47: #{tpu_custom_call.1} parent=27 // pred_region
          %p500 = scmp.lt.s32.totalorder %s33, 1
          %s501 = scalar_select %p500, %s33, 1
          %s502 = scalar_lea.vmem %s5, %s501
        $region48: #{tpu_custom_call.1} parent=27 // pred_fallthru
          _
        // Predicated region
        $region49: #{tpu_custom_call.1} parent=27 // pred_check
          %p503 = pneg %p213
        $region50: #{tpu_custom_call.1} parent=27 // pred_check_branch
          %505 = sbr.rel (%p503) target = $region52
        $region51: #{tpu_custom_call.1} parent=27 // pred_region
          %p506 = scmp.lt.s32.totalorder %s33, 1
          %s507 = scalar_select %p506, %s33, 1
          %s508 = scalar_lea.vmem %s6, %s507
        $region52: #{tpu_custom_call.1} parent=27 // pred_fallthru
          _
        // Predicated region
        $region53: #{tpu_custom_call.1} parent=27 // pred_check
          %p509 = pneg %p239
        $region54: #{tpu_custom_call.1} parent=27 // pred_check_branch
          %511 = sbr.rel (%p509) target = $region56
        $region55: #{tpu_custom_call.1} parent=27 // pred_region
          %p512 = scmp.lt.s32.totalorder %s33, 1
          %s513 = scalar_select %p512, %s33, 1
          %s514 = scalar_lea.vmem %s7, %s513
        $region56: #{tpu_custom_call.1} parent=27 // pred_fallthru
          _
        // Predicated region
        $region57: #{tpu_custom_call.1} parent=27 // pred_check
          %p515 = pneg %p265
        $region58: #{tpu_custom_call.1} parent=27 // pred_check_branch
          %517 = sbr.rel (%p515) target = $region60
        $region59: #{tpu_custom_call.1} parent=27 // pred_region
          %p518 = scmp.lt.s32.totalorder %s33, 1
          %s519 = scalar_select %p518, %s33, 1
          %s520 = smul.addr %s519, 4
          %s521 = smul.addr %s520, 4
          %s522 = scalar_lea.vmem %s8, %s521
        $region60: #{tpu_custom_call.1} parent=27 // pred_fallthru
          _
        // Predicated region
        $region61: #{tpu_custom_call.1} parent=27 // pred_check
          %p523 = pneg %p291
        $region62: #{tpu_custom_call.1} parent=27 // pred_check_branch
          %525 = sbr.rel (%p523) target = $region64
        $region63: #{tpu_custom_call.1} parent=27 // pred_region
          %p526 = scmp.lt.s32.totalorder %s33, 1
          %s527 = scalar_select %p526, %s33, 1
          %s528 = scalar_lea.vmem %s9, %s527
        $region64: #{tpu_custom_call.1} parent=27 // pred_fallthru
          _
        // Predicated region
        $region65: #{tpu_custom_call.1} parent=27 // pred_check
          %p529 = pneg %p317
        $region66: #{tpu_custom_call.1} parent=27 // pred_check_branch
          %531 = sbr.rel (%p529) target = $region68
        $region67: #{tpu_custom_call.1} parent=27 // pred_region
          %p532 = scmp.lt.s32.totalorder %s33, 1
          %s533 = scalar_select %p532, %s33, 1
          %s534 = smul.addr %s533, 8
          %s535 = smul.addr %s534, 4
          %s536 = scalar_lea.vmem %s10, %s535
        $region68: #{tpu_custom_call.1} parent=27 // pred_fallthru
          _
        // Predicated region
        $region69: #{tpu_custom_call.1} parent=27 // pred_check
          %p537 = pneg %p343
        $region70: #{tpu_custom_call.1} parent=27 // pred_check_branch
          %539 = sbr.rel (%p537) target = $region72
        $region71: #{tpu_custom_call.1} parent=27 // pred_region
          %p540 = scmp.lt.s32.totalorder %s33, 1
          %s541 = scalar_select %p540, %s33, 1
          %s542 = scalar_lea.vmem %s11, %s541
        $region72: #{tpu_custom_call.1} parent=27 // pred_fallthru
          _
      $region28: #{tpu_custom_call.1} parent=5 // pred_fallthru
        _
      %p543 = scmp.le.s32.totalorder 1, %s25
      %p544 = scmp.lt.s32.totalorder %s25, 3
      %p545 = pnand %p543, %p544
      %p546 = pneg %p545
      // Predicated region
      $region73: #{tpu_custom_call.1} parent=5 // pred_check
        _
      $region74: #{tpu_custom_call.1} parent=5 // pred_check_branch
        %548 = sbr.rel (%p545) target = $region76
      $region75: #{tpu_custom_call.1} parent=5 // pred_region
        %s549 = ssub.s32 %s25, 1
        // Predicated region
        $region77: #{tpu_custom_call.1} parent=75 // pred_check
          %p550 = pneg %p63
        $region78: #{tpu_custom_call.1} parent=75 // pred_check_branch
          %552 = sbr.rel (%p550) target = $region80
        $region79: #{tpu_custom_call.1} parent=75 // pred_region
          %553 = dma.done [#allocation5], 256
        $region80: #{tpu_custom_call.1} parent=75 // pred_fallthru
          _
        %s554 = sand.u32 %s76, 1
        %s555 = scalar_lea.sflag [#allocation8], %s554
        %s556 = sand.u32 %s76, 1
        %s557 = scalar_lea.vmem [#allocation7], %s556
        // Predicated region
        $region81: #{tpu_custom_call.1} parent=75 // pred_check
          %p558 = pneg %p89
        $region82: #{tpu_custom_call.1} parent=75 // pred_check_branch
          %560 = sbr.rel (%p558) target = $region84
        $region83: #{tpu_custom_call.1} parent=75 // pred_region
          %561 = dma.done %s555, 16
        $region84: #{tpu_custom_call.1} parent=75 // pred_fallthru
          _
        %p562 = pneg %p63
        %p563 = pneg %p60
        %s564 = sand.u32 %s76, 1
        %s565 = scalar_lea.sflag [#allocation8], %s564
        %s566 = sand.u32 %s76, 1
        %s567 = scalar_lea.vmem [#allocation7], %s566
        %p568 = pneg %p89
        %p569 = pneg %p86
        %p570 = scmp.lt.s32.totalorder %s35, 1
        %s571 = scalar_select %p570, %s35, 1
        %s572 = scalar_lea.vmem %s2, %s571
        %p573 = pneg %p115
        %p574 = pneg %p112
        %p575 = scmp.lt.s32.totalorder %s35, 1
        %s576 = scalar_select %p575, %s35, 1
        %s577 = smul.addr %s576, 4
        %s578 = smul.addr %s577, 4
        %s579 = scalar_lea.vmem %s3, %s578
        %p580 = pneg %p141
        %p581 = pneg %p138
        %p582 = scmp.lt.s32.totalorder %s35, 1
        %s583 = scalar_select %p582, %s35, 1
        %s584 = smul.addr %s583, 4
        %s585 = smul.addr %s584, 4
        %s586 = scalar_lea.vmem %s4, %s585
        %p587 = pneg %p167
        %p588 = pneg %p164
        %p589 = scmp.lt.s32.totalorder %s35, 1
        %s590 = scalar_select %p589, %s35, 1
        %s591 = scalar_lea.vmem %s5, %s590
        %p592 = pneg %p193
        %p593 = pneg %p190
        %p594 = scmp.lt.s32.totalorder %s35, 1
        %s595 = scalar_select %p594, %s35, 1
        %s596 = scalar_lea.vmem %s6, %s595
        %p597 = pneg %p219
        %p598 = pneg %p216
        %p599 = scmp.lt.s32.totalorder %s35, 1
        %s600 = scalar_select %p599, %s35, 1
        %s601 = scalar_lea.vmem %s7, %s600
        %p602 = pneg %p245
        %p603 = pneg %p242
        %p604 = scmp.lt.s32.totalorder %s35, 1
        %s605 = scalar_select %p604, %s35, 1
        %s606 = smul.addr %s605, 4
        %s607 = smul.addr %s606, 4
        %s608 = scalar_lea.vmem %s8, %s607
        %p609 = pneg %p271
        %p610 = pneg %p268
        %p611 = scmp.lt.s32.totalorder %s35, 1
        %s612 = scalar_select %p611, %s35, 1
        %s613 = scalar_lea.vmem %s9, %s612
        %p614 = pneg %p297
        %p615 = pneg %p294
        %p616 = scmp.lt.s32.totalorder %s35, 1
        %s617 = scalar_select %p616, %s35, 1
        %s618 = smul.addr %s617, 8
        %s619 = smul.addr %s618, 4
        %s620 = scalar_lea.vmem %s10, %s619
        %p621 = pneg %p323
        %p622 = pneg %p320
        %p623 = scmp.lt.s32.totalorder %s35, 1
        %s624 = scalar_select %p623, %s35, 1
        %s625 = scalar_lea.vmem %s11, %s624
        %p626 = pneg %p349
        %p627 = pneg %p346
        %p628 = pneg %p370
        %p629 = pneg %p367
        %p630 = pneg %p391
        %p631 = pneg %p388
        %p632 = pneg %p417
        %p633 = pneg %p414
        %p634 = scmp.lt.s32.totalorder %s35, 1
        %s635 = scalar_select %p634, %s35, 1
        %s636 = scalar_lea.vmem %s2, %s635
        %p637 = scmp.lt.s32.totalorder %s35, 1
        %s638 = scalar_select %p637, %s35, 1
        %s639 = smul.addr %s638, 4
        %s640 = smul.addr %s639, 4
        %s641 = scalar_lea.vmem %s3, %s640
        %p642 = scmp.lt.s32.totalorder %s35, 1
        %s643 = scalar_select %p642, %s35, 1
        %s644 = smul.addr %s643, 4
        %s645 = smul.addr %s644, 4
        %s646 = scalar_lea.vmem %s4, %s645
        %p647 = scmp.lt.s32.totalorder %s35, 1
        %s648 = scalar_select %p647, %s35, 1
        %s649 = scalar_lea.vmem %s5, %s648
        %p650 = scmp.lt.s32.totalorder %s35, 1
        %s651 = scalar_select %p650, %s35, 1
        %s652 = scalar_lea.vmem %s6, %s651
        %p653 = scmp.lt.s32.totalorder %s35, 1
        %s654 = scalar_select %p653, %s35, 1
        %s655 = scalar_lea.vmem %s7, %s654
        %p656 = scmp.lt.s32.totalorder %s35, 1
        %s657 = scalar_select %p656, %s35, 1
        %s658 = smul.addr %s657, 4
        %s659 = smul.addr %s658, 4
        %s660 = scalar_lea.vmem %s8, %s659
        %p661 = scmp.lt.s32.totalorder %s35, 1
        %s662 = scalar_select %p661, %s35, 1
        %s663 = scalar_lea.vmem %s9, %s662
        %p664 = scmp.lt.s32.totalorder %s35, 1
        %s665 = scalar_select %p664, %s35, 1
        %s666 = smul.addr %s665, 8
        %s667 = smul.addr %s666, 4
        %s668 = scalar_lea.vmem %s10, %s667
        %p669 = scmp.lt.s32.totalorder %s35, 1
        %s670 = scalar_select %p669, %s35, 1
        %s671 = scalar_lea.vmem %s11, %s670
        %p673 = scmp.eq.s32.totalorder %s35, 0
        // Predicated region
        $region85: #{tpu_custom_call.1} parent=75 // pred_check
          %p674 = pneg %p673
        $region86: #{tpu_custom_call.1} parent=75 // pred_check_branch
          %676 = sbr.rel (%p674) target = $region88
        $region87: #{tpu_custom_call.1} parent=75 // pred_region
          %v677 = vld [vmem:[#allocation4] sm:$0xff]
          %v678 = vld [vmem:[#allocation4 + $0x8] sm:$0xff]
          %vm679 = vcmask 261120
          %680 = vst.msk [vmem:[#allocation2] sm:$0xff] %vm679, %v677
          %681 = vst.msk [vmem:[#allocation2 + $0x8] sm:$0xff] %vm679, %v678
        $region88: #{tpu_custom_call.1} parent=75 // pred_fallthru
          _
        %v682 = vld [vmem:[#allocation2] sm:$0xff]
        %v683 = vld [vmem:[#allocation2 + $0x8] sm:$0xff]
        %v684 = vld [vmem:[%s557] sm:$0x1]
        %v685 = vld [vmem:[%s636] sm:$0x1]
        %vm686 = vcmask 261120
        %v687 = vsel %vm686, %v682, 0.0
        %688 = vadd.xlane.f32.xlu0 %v687
        %v689 = vpop.xlane.xlu0 %688
        %v690 = vsel %vm686, %v683, 0.0
        %691 = vadd.xlane.f32.xlu0 %v690
        %v692 = vpop.xlane.xlu0 %691
        %v693 = vrcp.pop 32.0
        %v694 = vmul.f32 %v689, %v693
        %v695 = vmul.f32 %v692, %v693
        %v696 = vsub.f32 %v682, %v694
        %v697 = vsub.f32 %v683, %v695
        %v698 = vmul.f32 %v696, %v696
        %v699 = vmul.f32 %v697, %v697
        %v700 = vsel %vm686, %v698, 0.0
        %701 = vadd.xlane.f32.xlu0 %v700
        %v702 = vpop.xlane.xlu0 %701
        %v703 = vsel %vm686, %v699, 0.0
        %704 = vadd.xlane.f32.xlu0 %v703
        %v705 = vpop.xlane.xlu0 %704
        %v706 = vmul.f32 %v702, %v693
        %v707 = vmul.f32 %v705, %v693
        %v708 = vadd.f32 %v706, 1e-05
        %v709 = vadd.f32 %v707, 1e-05
        %v710 = vrsqrt.pop %v708
        %v711 = vrsqrt.pop %v709
        %v712 = vmul.f32 %v696, %v710
        %v713 = vmul.f32 %v697, %v711
        %v715 = vlaneseq
        %v716 = vshrl.u32 %v715, 7
        %v717 = vsub.s32 0, %v716
        %v718 = vrot.slane %v684, %v717
        %v720 = vmul.f32 %v712, %v718
        %v721 = vmul.f32 %v713, %v718
        %v723 = vlaneseq
        %v724 = vshrl.u32 %v723, 7
        %v725 = vsub.s32 0, %v724
        %v726 = vrot.slane %v685, %v725
        %v728 = vadd.f32 %v720, %v726
        %v729 = vadd.f32 %v721, %v726
        %v730 = vpack.c.bf16 %v729, %v728
        %v731 = vld [vmem:[%s641] sm:$0xf]
        %v732 = vld [vmem:[%s641 + $0x4] sm:$0xf]
        %v733 = vld [vmem:[%s641 + $0x8] sm:$0xf]
        %v734 = vld [vmem:[%s641 + $0xc] sm:$0xf]
        %v739 = vunpack.c.l.b16 %v731
        %v740 = vunpack.c.l.b16 %v732
        %v741 = vunpack.c.l.b16 %v733
        %v742 = vunpack.c.l.b16 %v734
        %v743 = vpack.c.b16 %v740, %v739
        %v744 = vpack.c.b16 %v742, %v741
        %v748 = vsel %vm686, %v730, 0
        %750 = vmatprep.subr.bf16.mxu0 0
        %751 = vmatpush1.bf16.msra.mxu0 0
        %752 = vmatprep.subr.bf16.mxu0 0
        %753 = vmatpush1.bf16.msra.mxu0 0
        %754 = vmatprep.subr.bf16.mxu0 0
        %755 = vmatpush1.bf16.msra.mxu0 0
        %756 = vmatprep.subr.bf16.mxu0 0
        %757 = vmatpush1.bf16.msra.mxu0 0
        %758 = vmatprep.subr.bf16.mxu0 0
        %759 = vmatpush1.bf16.msra.mxu0 0
        %760 = vmatprep.subr.bf16.mxu0 0
        %761 = vmatpush1.bf16.msra.mxu0 0
        %762 = vmatprep.subr.bf16.mxu0 0
        %763 = vmatpush1.bf16.msra.mxu0 %v744
        %764 = vmatprep.subr.bf16.mxu0 0
        %765 = vmatpush1.bf16.msra.mxu0 %v743
        %766 = vmatprep.subr.bf16.mxu0 0
        %767 = vmatpush2.bf16.msra.mxu0 0
        %768 = vmatprep.subr.bf16.mxu0 0
        %769 = vmatpush2.bf16.msra.mxu0 0
        %770 = vmatprep.subr.bf16.mxu0 0
        %771 = vmatpush2.bf16.msra.mxu0 0
        %772 = vmatprep.subr.bf16.mxu0 0
        %773 = vmatpush2.bf16.msra.mxu0 0
        %774 = vmatprep.subr.bf16.mxu0 0
        %775 = vmatpush2.bf16.msra.mxu0 0
        %776 = vmatprep.subr.bf16.mxu0 0
        %777 = vmatpush2.bf16.msra.mxu0 0
        %778 = vmatprep.subr.bf16.mxu0 0
        %779 = vmatpush2.bf16.msra.mxu0 0
        %780 = vmatprep.subr.bf16.mxu0 0
        %781 = vmatpush2.bf16.msra.mxu0 0
        %782 = vmatprep.mubr.bf16.mxu0 0
        %783 = vmatmul.mubr.bf16.gmra.mxu0 %v748
        %v784 = vpop.f32.mrf.mxu0
        %v785 = vadd.f32 0.0, %v784
        %v786 = vpop.f32.mrf.mxu0
        %v787 = vpop.f32.mrf.mxu0
        %v788 = vadd.f32 0.0, %v787
        %v789 = vpop.f32.mrf.mxu0
        %790 = vdwg.mxu0
        %v791 = vpack.c.bf16 %v788, %v785
        %793 = vrot.lane.b32.xlu0 %v791, 96
        %v794 = vpop.permute.xlu0 %793
        %vm795 = vcmask 64512
        %v797 = vsel %vm795, %v791, 0
        %v800 = vsel %vm795, %v794, 0
        %802 = vmatprep.subr.bf16.mxu0 0
        %803 = vmatpush1.bf16.xpose.msra.mxu0 0
        %804 = vmatprep.subr.bf16.mxu0 0
        %805 = vmatpush1.bf16.xpose.msra.mxu0 0
        %806 = vmatprep.subr.bf16.mxu0 0
        %807 = vmatpush1.bf16.xpose.msra.mxu0 0
        %808 = vmatprep.subr.bf16.mxu0 0
        %809 = vmatpush1.bf16.xpose.msra.mxu0 0
        %810 = vmatprep.subr.bf16.mxu0 0
        %811 = vmatpush1.bf16.xpose.msra.mxu0 0
        %812 = vmatprep.subr.bf16.mxu0 0
        %813 = vmatpush1.bf16.xpose.msra.mxu0 0
        %814 = vmatprep.subr.bf16.mxu0 0
        %815 = vmatpush1.bf16.xpose.msra.mxu0 0
        %816 = vmatprep.subr.bf16.mxu0 0
        %817 = vmatpush1.bf16.xpose.msra.mxu0 %v800
        %818 = vmatprep.subr.bf16.mxu0 0
        %819 = vmatpush2.bf16.xpose.msra.mxu0 0
        %820 = vmatprep.subr.bf16.mxu0 0
        %821 = vmatpush2.bf16.xpose.msra.mxu0 0
        %822 = vmatprep.subr.bf16.mxu0 0
        %823 = vmatpush2.bf16.xpose.msra.mxu0 0
        %824 = vmatprep.subr.bf16.mxu0 0
        %825 = vmatpush2.bf16.xpose.msra.mxu0 0
        %826 = vmatprep.subr.bf16.mxu0 0
        %827 = vmatpush2.bf16.xpose.msra.mxu0 0
        %828 = vmatprep.subr.bf16.mxu0 0
        %829 = vmatpush2.bf16.xpose.msra.mxu0 0
        %830 = vmatprep.subr.bf16.mxu0 0
        %831 = vmatpush2.bf16.xpose.msra.mxu0 0
        %832 = vmatprep.subr.bf16.mxu0 0
        %833 = vmatpush2.bf16.xpose.msra.mxu0 0
        %834 = vmatprep.mubr.bf16.mxu0 0
        %835 = vmatmul.mubr.bf16.gmra.mxu0 %v797
        %v836 = vpop.f32.mrf.mxu0
        %v837 = vadd.f32 0.0, %v836
        %v838 = vpop.f32.mrf.mxu0
        %v839 = vpop.f32.mrf.mxu0
        %v840 = vpop.f32.mrf.mxu0
        %841 = vdwg.mxu0
        %v842 = vsel %vm795, %v837, -inf
        %843 = vmax.xlane.f32.xlu0 %v842
        %v844 = vpop.xlane.xlu0 %843
        %v845 = vsub.f32 %v837, %v844
        %v846 = vmul.f32 %v845, 1.442695
        %v847 = vpow.pop %v846
        %v848 = vsel %vm795, %v847, 0.0
        %849 = vadd.xlane.f32.xlu0 %v848
        %v850 = vpop.xlane.xlu0 %849
        %v851 = vpack.c.bf16 %v847, %v847
        %852 = vrot.lane.b32.xlu0 %v791, 64
        %v853 = vpop.permute.xlu0 %852
        %v855 = vsel %vm795, %v851, 0
        %vm857 = vcmask 1043456
        %v859 = vsel %vm857, %v853, 0
        %861 = vmatprep.subr.bf16.mxu0 0
        %862 = vmatpush1.bf16.msra.mxu0 0
        %863 = vmatprep.subr.bf16.mxu0 0
        %864 = vmatpush1.bf16.msra.mxu0 0
        %865 = vmatprep.subr.bf16.mxu0 0
        %866 = vmatpush1.bf16.msra.mxu0 0
        %867 = vmatprep.subr.bf16.mxu0 0
        %868 = vmatpush1.bf16.msra.mxu0 0
        %869 = vmatprep.subr.bf16.mxu0 0
        %870 = vmatpush1.bf16.msra.mxu0 0
        %871 = vmatprep.subr.bf16.mxu0 0
        %872 = vmatpush1.bf16.msra.mxu0 0
        %873 = vmatprep.subr.bf16.mxu0 0
        %874 = vmatpush1.bf16.msra.mxu0 0
        %875 = vmatprep.subr.bf16.mxu0 0
        %876 = vmatpush1.bf16.msra.mxu0 %v859
        %877 = vmatprep.subr.bf16.mxu0 0
        %878 = vmatpush2.bf16.msra.mxu0 0
        %879 = vmatprep.subr.bf16.mxu0 0
        %880 = vmatpush2.bf16.msra.mxu0 0
        %881 = vmatprep.subr.bf16.mxu0 0
        %882 = vmatpush2.bf16.msra.mxu0 0
        %883 = vmatprep.subr.bf16.mxu0 0
        %884 = vmatpush2.bf16.msra.mxu0 0
        %885 = vmatprep.subr.bf16.mxu0 0
        %886 = vmatpush2.bf16.msra.mxu0 0
        %887 = vmatprep.subr.bf16.mxu0 0
        %888 = vmatpush2.bf16.msra.mxu0 0
        %889 = vmatprep.subr.bf16.mxu0 0
        %890 = vmatpush2.bf16.msra.mxu0 0
        %891 = vmatprep.subr.bf16.mxu0 0
        %892 = vmatpush2.bf16.msra.mxu0 0
        %893 = vmatprep.mubr.bf16.mxu0 0
        %894 = vmatmul.mubr.bf16.gmra.mxu0 %v855
        %v895 = vpop.f32.mrf.mxu0
        %v896 = vadd.f32 0.0, %v895
        %v897 = vpop.f32.mrf.mxu0
        %v898 = vpop.f32.mrf.mxu0
        %v899 = vpop.f32.mrf.mxu0
        %900 = vdwg.mxu0
        %v901 = vrcp.pop %v850
        %v902 = vmul.f32 %v896, %v901
        %v903 = vpack.c.bf16 %v902, %v902
        %vm904 = vcmask 60416
        %905 = vst.msk [vmem:[#allocation3] sm:$0xf] %vm904, %v903
        %906 = vrot.lane.b32.xlu0 %v791, 120
        %v907 = vpop.permute.xlu0 %906
        %908 = vrot.lane.b32.xlu0 %v791, 88
        %v909 = vpop.permute.xlu0 %908
        %v911 = vsel %vm795, %v907, 0
        %v914 = vsel %vm795, %v909, 0
        %916 = vmatprep.subr.bf16.mxu0 0
        %917 = vmatpush1.bf16.xpose.msra.mxu0 0
        %918 = vmatprep.subr.bf16.mxu0 0
        %919 = vmatpush1.bf16.xpose.msra.mxu0 0
        %920 = vmatprep.subr.bf16.mxu0 0
        %921 = vmatpush1.bf16.xpose.msra.mxu0 0
        %922 = vmatprep.subr.bf16.mxu0 0
        %923 = vmatpush1.bf16.xpose.msra.mxu0 0
        %924 = vmatprep.subr.bf16.mxu0 0
        %925 = vmatpush1.bf16.xpose.msra.mxu0 0
        %926 = vmatprep.subr.bf16.mxu0 0
        %927 = vmatpush1.bf16.xpose.msra.mxu0 0
        %928 = vmatprep.subr.bf16.mxu0 0
        %929 = vmatpush1.bf16.xpose.msra.mxu0 0
        %930 = vmatprep.subr.bf16.mxu0 0
        %931 = vmatpush1.bf16.xpose.msra.mxu0 %v914
        %932 = vmatprep.subr.bf16.mxu0 0
        %933 = vmatpush2.bf16.xpose.msra.mxu0 0
        %934 = vmatprep.subr.bf16.mxu0 0
        %935 = vmatpush2.bf16.xpose.msra.mxu0 0
        %936 = vmatprep.subr.bf16.mxu0 0
        %937 = vmatpush2.bf16.xpose.msra.mxu0 0
        %938 = vmatprep.subr.bf16.mxu0 0
        %939 = vmatpush2.bf16.xpose.msra.mxu0 0
        %940 = vmatprep.subr.bf16.mxu0 0
        %941 = vmatpush2.bf16.xpose.msra.mxu0 0
        %942 = vmatprep.subr.bf16.mxu0 0
        %943 = vmatpush2.bf16.xpose.msra.mxu0 0
        %944 = vmatprep.subr.bf16.mxu0 0
        %945 = vmatpush2.bf16.xpose.msra.mxu0 0
        %946 = vmatprep.subr.bf16.mxu0 0
        %947 = vmatpush2.bf16.xpose.msra.mxu0 0
        %948 = vmatprep.mubr.bf16.mxu0 0
        %949 = vmatmul.mubr.bf16.gmra.mxu0 %v911
        %v950 = vpop.f32.mrf.mxu0
        %v951 = vadd.f32 0.0, %v950
        %v952 = vpop.f32.mrf.mxu0
        %v953 = vpop.f32.mrf.mxu0
        %v954 = vpop.f32.mrf.mxu0
        %955 = vdwg.mxu0
        %v956 = vsel %vm795, %v951, -inf
        %957 = vmax.xlane.f32.xlu0 %v956
        %v958 = vpop.xlane.xlu0 %957
        %v959 = vsub.f32 %v951, %v958
        %v960 = vmul.f32 %v959, 1.442695
        %v961 = vpow.pop %v960
        %v962 = vsel %vm795, %v961, 0.0
        %963 = vadd.xlane.f32.xlu0 %v962
        %v964 = vpop.xlane.xlu0 %963
        %v965 = vpack.c.bf16 %v961, %v961
        %966 = vrot.lane.b32.xlu0 %v791, 56
        %v967 = vpop.permute.xlu0 %966
        %v969 = vsel %vm795, %v965, 0
        %v972 = vsel %vm857, %v967, 0
        %974 = vmatprep.subr.bf16.mxu0 0
        %975 = vmatpush1.bf16.msra.mxu0 0
        %976 = vmatprep.subr.bf16.mxu0 0
        %977 = vmatpush1.bf16.msra.mxu0 0
        %978 = vmatprep.subr.bf16.mxu0 0
        %979 = vmatpush1.bf16.msra.mxu0 0
        %980 = vmatprep.subr.bf16.mxu0 0
        %981 = vmatpush1.bf16.msra.mxu0 0
        %982 = vmatprep.subr.bf16.mxu0 0
        %983 = vmatpush1.bf16.msra.mxu0 0
        %984 = vmatprep.subr.bf16.mxu0 0
        %985 = vmatpush1.bf16.msra.mxu0 0
        %986 = vmatprep.subr.bf16.mxu0 0
        %987 = vmatpush1.bf16.msra.mxu0 0
        %988 = vmatprep.subr.bf16.mxu0 0
        %989 = vmatpush1.bf16.msra.mxu0 %v972
        %990 = vmatprep.subr.bf16.mxu0 0
        %991 = vmatpush2.bf16.msra.mxu0 0
        %992 = vmatprep.subr.bf16.mxu0 0
        %993 = vmatpush2.bf16.msra.mxu0 0
        %994 = vmatprep.subr.bf16.mxu0 0
        %995 = vmatpush2.bf16.msra.mxu0 0
        %996 = vmatprep.subr.bf16.mxu0 0
        %997 = vmatpush2.bf16.msra.mxu0 0
        %998 = vmatprep.subr.bf16.mxu0 0
        %999 = vmatpush2.bf16.msra.mxu0 0
        %1000 = vmatprep.subr.bf16.mxu0 0
        %1001 = vmatpush2.bf16.msra.mxu0 0
        %1002 = vmatprep.subr.bf16.mxu0 0
        %1003 = vmatpush2.bf16.msra.mxu0 0
        %1004 = vmatprep.subr.bf16.mxu0 0
        %1005 = vmatpush2.bf16.msra.mxu0 0
        %1006 = vmatprep.mubr.bf16.mxu0 0
        %1007 = vmatmul.mubr.bf16.gmra.mxu0 %v969
        %v1008 = vpop.f32.mrf.mxu0
        %v1009 = vadd.f32 0.0, %v1008
        %v1010 = vpop.f32.mrf.mxu0
        %v1011 = vpop.f32.mrf.mxu0
        %v1012 = vpop.f32.mrf.mxu0
        %1013 = vdwg.mxu0
        %v1014 = vrcp.pop %v964
        %v1015 = vmul.f32 %v1009, %v1014
        %v1016 = vpack.c.bf16 %v1015, %v1015
        %v1018 = vunpack.c.l.b16 %v1016
        %v1019 = vpack.c.b16 %v1018, %v1018
        %1020 = vrot.lane.b32.xlu0 %v1019, 8
        %v1021 = vpop.permute.xlu0 %1020
        %vm1023 = vcmask 126016
        %1024 = vst.msk [vmem:[#allocation3] sm:$0xf] %vm1023, %v1021
        %1025 = vrot.lane.b32.xlu0 %v791, 112
        %v1026 = vpop.permute.xlu0 %1025
        %1027 = vrot.lane.b32.xlu0 %v791, 80
        %v1028 = vpop.permute.xlu0 %1027
        %v1030 = vsel %vm795, %v1026, 0
        %v1033 = vsel %vm795, %v1028, 0
        %1035 = vmatprep.subr.bf16.mxu0 0
        %1036 = vmatpush1.bf16.xpose.msra.mxu0 0
        %1037 = vmatprep.subr.bf16.mxu0 0
        %1038 = vmatpush1.bf16.xpose.msra.mxu0 0
        %1039 = vmatprep.subr.bf16.mxu0 0
        %1040 = vmatpush1.bf16.xpose.msra.mxu0 0
        %1041 = vmatprep.subr.bf16.mxu0 0
        %1042 = vmatpush1.bf16.xpose.msra.mxu0 0
        %1043 = vmatprep.subr.bf16.mxu0 0
        %1044 = vmatpush1.bf16.xpose.msra.mxu0 0
        %1045 = vmatprep.subr.bf16.mxu0 0
        %1046 = vmatpush1.bf16.xpose.msra.mxu0 0
        %1047 = vmatprep.subr.bf16.mxu0 0
        %1048 = vmatpush1.bf16.xpose.msra.mxu0 0
        %1049 = vmatprep.subr.bf16.mxu0 0
        %1050 = vmatpush1.bf16.xpose.msra.mxu0 %v1033
        %1051 = vmatprep.subr.bf16.mxu0 0
        %1052 = vmatpush2.bf16.xpose.msra.mxu0 0
        %1053 = vmatprep.subr.bf16.mxu0 0
        %1054 = vmatpush2.bf16.xpose.msra.mxu0 0
        %1055 = vmatprep.subr.bf16.mxu0 0
        %1056 = vmatpush2.bf16.xpose.msra.mxu0 0
        %1057 = vmatprep.subr.bf16.mxu0 0
        %1058 = vmatpush2.bf16.xpose.msra.mxu0 0
        %1059 = vmatprep.subr.bf16.mxu0 0
        %1060 = vmatpush2.bf16.xpose.msra.mxu0 0
        %1061 = vmatprep.subr.bf16.mxu0 0
        %1062 = vmatpush2.bf16.xpose.msra.mxu0 0
        %1063 = vmatprep.subr.bf16.mxu0 0
        %1064 = vmatpush2.bf16.xpose.msra.mxu0 0
        %1065 = vmatprep.subr.bf16.mxu0 0
        %1066 = vmatpush2.bf16.xpose.msra.mxu0 0
        %1067 = vmatprep.mubr.bf16.mxu0 0
        %1068 = vmatmul.mubr.bf16.gmra.mxu0 %v1030
        %v1069 = vpop.f32.mrf.mxu0
        %v1070 = vadd.f32 0.0, %v1069
        %v1071 = vpop.f32.mrf.mxu0
        %v1072 = vpop.f32.mrf.mxu0
        %v1073 = vpop.f32.mrf.mxu0
        %1074 = vdwg.mxu0
        %v1075 = vsel %vm795, %v1070, -inf
        %1076 = vmax.xlane.f32.xlu0 %v1075
        %v1077 = vpop.xlane.xlu0 %1076
        %v1078 = vsub.f32 %v1070, %v1077
        %v1079 = vmul.f32 %v1078, 1.442695
        %v1080 = vpow.pop %v1079
        %v1081 = vsel %vm795, %v1080, 0.0
        %1082 = vadd.xlane.f32.xlu0 %v1081
        %v1083 = vpop.xlane.xlu0 %1082
        %v1084 = vpack.c.bf16 %v1080, %v1080
        %1085 = vrot.lane.b32.xlu0 %v791, 48
        %v1086 = vpop.permute.xlu0 %1085
        %v1088 = vsel %vm795, %v1084, 0
        %v1091 = vsel %vm857, %v1086, 0
        %1093 = vmatprep.subr.bf16.mxu0 0
        %1094 = vmatpush1.bf16.msra.mxu0 0
        %1095 = vmatprep.subr.bf16.mxu0 0
        %1096 = vmatpush1.bf16.msra.mxu0 0
        %1097 = vmatprep.subr.bf16.mxu0 0
        %1098 = vmatpush1.bf16.msra.mxu0 0
        %1099 = vmatprep.subr.bf16.mxu0 0
        %1100 = vmatpush1.bf16.msra.mxu0 0
        %1101 = vmatprep.subr.bf16.mxu0 0
        %1102 = vmatpush1.bf16.msra.mxu0 0
        %1103 = vmatprep.subr.bf16.mxu0 0
        %1104 = vmatpush1.bf16.msra.mxu0 0
        %1105 = vmatprep.subr.bf16.mxu0 0
        %1106 = vmatpush1.bf16.msra.mxu0 0
        %1107 = vmatprep.subr.bf16.mxu0 0
        %1108 = vmatpush1.bf16.msra.mxu0 %v1091
        %1109 = vmatprep.subr.bf16.mxu0 0
        %1110 = vmatpush2.bf16.msra.mxu0 0
        %1111 = vmatprep.subr.bf16.mxu0 0
        %1112 = vmatpush2.bf16.msra.mxu0 0
        %1113 = vmatprep.subr.bf16.mxu0 0
        %1114 = vmatpush2.bf16.msra.mxu0 0
        %1115 = vmatprep.subr.bf16.mxu0 0
        %1116 = vmatpush2.bf16.msra.mxu0 0
        %1117 = vmatprep.subr.bf16.mxu0 0
        %1118 = vmatpush2.bf16.msra.mxu0 0
        %1119 = vmatprep.subr.bf16.mxu0 0
        %1120 = vmatpush2.bf16.msra.mxu0 0
        %1121 = vmatprep.subr.bf16.mxu0 0
        %1122 = vmatpush2.bf16.msra.mxu0 0
        %1123 = vmatprep.subr.bf16.mxu0 0
        %1124 = vmatpush2.bf16.msra.mxu0 0
        %1125 = vmatprep.mubr.bf16.mxu0 0
        %1126 = vmatmul.mubr.bf16.gmra.mxu0 %v1088
        %v1127 = vpop.f32.mrf.mxu0
        %v1128 = vadd.f32 0.0, %v1127
        %v1129 = vpop.f32.mrf.mxu0
        %v1130 = vpop.f32.mrf.mxu0
        %v1131 = vpop.f32.mrf.mxu0
        %1132 = vdwg.mxu0
        %v1133 = vrcp.pop %v1083
        %v1134 = vmul.f32 %v1128, %v1133
        %v1135 = vpack.c.bf16 %v1134, %v1134
        %v1137 = vunpack.c.l.b16 %v1135
        %v1138 = vpack.c.b16 %v1137, %v1137
        %1139 = vrot.lane.b32.xlu0 %v1138, 16
        %v1140 = vpop.permute.xlu0 %1139
        %vm1142 = vcmask 191616
        %1143 = vst.msk [vmem:[#allocation3] sm:$0xf] %vm1142, %v1140
        %1144 = vrot.lane.b32.xlu0 %v791, 104
        %v1145 = vpop.permute.xlu0 %1144
        %1146 = vrot.lane.b32.xlu0 %v791, 72
        %v1147 = vpop.permute.xlu0 %1146
        %v1149 = vsel %vm795, %v1145, 0
        %v1152 = vsel %vm795, %v1147, 0
        %1154 = vmatprep.subr.bf16.mxu0 0
        %1155 = vmatpush1.bf16.xpose.msra.mxu0 0
        %1156 = vmatprep.subr.bf16.mxu0 0
        %1157 = vmatpush1.bf16.xpose.msra.mxu0 0
        %1158 = vmatprep.subr.bf16.mxu0 0
        %1159 = vmatpush1.bf16.xpose.msra.mxu0 0
        %1160 = vmatprep.subr.bf16.mxu0 0
        %1161 = vmatpush1.bf16.xpose.msra.mxu0 0
        %1162 = vmatprep.subr.bf16.mxu0 0
        %1163 = vmatpush1.bf16.xpose.msra.mxu0 0
        %1164 = vmatprep.subr.bf16.mxu0 0
        %1165 = vmatpush1.bf16.xpose.msra.mxu0 0
        %1166 = vmatprep.subr.bf16.mxu0 0
        %1167 = vmatpush1.bf16.xpose.msra.mxu0 0
        %1168 = vmatprep.subr.bf16.mxu0 0
        %1169 = vmatpush1.bf16.xpose.msra.mxu0 %v1152
        %1170 = vmatprep.subr.bf16.mxu0 0
        %1171 = vmatpush2.bf16.xpose.msra.mxu0 0
        %1172 = vmatprep.subr.bf16.mxu0 0
        %1173 = vmatpush2.bf16.xpose.msra.mxu0 0
        %1174 = vmatprep.subr.bf16.mxu0 0
        %1175 = vmatpush2.bf16.xpose.msra.mxu0 0
        %1176 = vmatprep.subr.bf16.mxu0 0
        %1177 = vmatpush2.bf16.xpose.msra.mxu0 0
        %1178 = vmatprep.subr.bf16.mxu0 0
        %1179 = vmatpush2.bf16.xpose.msra.mxu0 0
        %1180 = vmatprep.subr.bf16.mxu0 0
        %1181 = vmatpush2.bf16.xpose.msra.mxu0 0
        %1182 = vmatprep.subr.bf16.mxu0 0
        %1183 = vmatpush2.bf16.xpose.msra.mxu0 0
        %1184 = vmatprep.subr.bf16.mxu0 0
        %1185 = vmatpush2.bf16.xpose.msra.mxu0 0
        %1186 = vmatprep.mubr.bf16.mxu0 0
        %1187 = vmatmul.mubr.bf16.gmra.mxu0 %v1149
        %v1188 = vpop.f32.mrf.mxu0
        %v1189 = vadd.f32 0.0, %v1188
        %v1190 = vpop.f32.mrf.mxu0
        %v1191 = vpop.f32.mrf.mxu0
        %v1192 = vpop.f32.mrf.mxu0
        %1193 = vdwg.mxu0
        %v1194 = vsel %vm795, %v1189, -inf
        %1195 = vmax.xlane.f32.xlu0 %v1194
        %v1196 = vpop.xlane.xlu0 %1195
        %v1197 = vsub.f32 %v1189, %v1196
        %v1198 = vmul.f32 %v1197, 1.442695
        %v1199 = vpow.pop %v1198
        %v1200 = vsel %vm795, %v1199, 0.0
        %1201 = vadd.xlane.f32.xlu0 %v1200
        %v1202 = vpop.xlane.xlu0 %1201
        %v1203 = vpack.c.bf16 %v1199, %v1199
        %1204 = vrot.lane.b32.xlu0 %v791, 40
        %v1205 = vpop.permute.xlu0 %1204
        %v1207 = vsel %vm795, %v1203, 0
        %v1210 = vsel %vm857, %v1205, 0
        %1212 = vmatprep.subr.bf16.mxu0 0
        %1213 = vmatpush1.bf16.msra.mxu0 0
        %1214 = vmatprep.subr.bf16.mxu0 0
        %1215 = vmatpush1.bf16.msra.mxu0 0
        %1216 = vmatprep.subr.bf16.mxu0 0
        %1217 = vmatpush1.bf16.msra.mxu0 0
        %1218 = vmatprep.subr.bf16.mxu0 0
        %1219 = vmatpush1.bf16.msra.mxu0 0
        %1220 = vmatprep.subr.bf16.mxu0 0
        %1221 = vmatpush1.bf16.msra.mxu0 0
        %1222 = vmatprep.subr.bf16.mxu0 0
        %1223 = vmatpush1.bf16.msra.mxu0 0
        %1224 = vmatprep.subr.bf16.mxu0 0
        %1225 = vmatpush1.bf16.msra.mxu0 0
        %1226 = vmatprep.subr.bf16.mxu0 0
        %1227 = vmatpush1.bf16.msra.mxu0 %v1210
        %1228 = vmatprep.subr.bf16.mxu0 0
        %1229 = vmatpush2.bf16.msra.mxu0 0
        %1230 = vmatprep.subr.bf16.mxu0 0
        %1231 = vmatpush2.bf16.msra.mxu0 0
        %1232 = vmatprep.subr.bf16.mxu0 0
        %1233 = vmatpush2.bf16.msra.mxu0 0
        %1234 = vmatprep.subr.bf16.mxu0 0
        %1235 = vmatpush2.bf16.msra.mxu0 0
        %1236 = vmatprep.subr.bf16.mxu0 0
        %1237 = vmatpush2.bf16.msra.mxu0 0
        %1238 = vmatprep.subr.bf16.mxu0 0
        %1239 = vmatpush2.bf16.msra.mxu0 0
        %1240 = vmatprep.subr.bf16.mxu0 0
        %1241 = vmatpush2.bf16.msra.mxu0 0
        %1242 = vmatprep.subr.bf16.mxu0 0
        %1243 = vmatpush2.bf16.msra.mxu0 0
        %1244 = vmatprep.mubr.bf16.mxu0 0
        %1245 = vmatmul.mubr.bf16.gmra.mxu0 %v1207
        %v1246 = vpop.f32.mrf.mxu0
        %v1247 = vadd.f32 0.0, %v1246
        %v1248 = vpop.f32.mrf.mxu0
        %v1249 = vpop.f32.mrf.mxu0
        %v1250 = vpop.f32.mrf.mxu0
        %1251 = vdwg.mxu0
        %v1252 = vrcp.pop %v1202
        %v1253 = vmul.f32 %v1247, %v1252
        %v1254 = vpack.c.bf16 %v1253, %v1253
        %v1256 = vunpack.c.l.b16 %v1254
        %v1257 = vpack.c.b16 %v1256, %v1256
        %1258 = vrot.lane.b32.xlu0 %v1257, 24
        %v1259 = vpop.permute.xlu0 %1258
        %vm1261 = vcmask 257216
        %1262 = vst.msk [vmem:[#allocation3] sm:$0xf] %vm1261, %v1259
        %v1263 = vrot.slane %v791, 4
        %1264 = vrot.lane.b32.xlu0 %v1263, 96
        %v1265 = vpop.permute.xlu0 %1264
        %v1267 = vsel %vm795, %v1263, 0
        %v1270 = vsel %vm795, %v1265, 0
        %1272 = vmatprep.subr.bf16.mxu0 0
        %1273 = vmatpush1.bf16.xpose.msra.mxu0 0
        %1274 = vmatprep.subr.bf16.mxu0 0
        %1275 = vmatpush1.bf16.xpose.msra.mxu0 0
        %1276 = vmatprep.subr.bf16.mxu0 0
        %1277 = vmatpush1.bf16.xpose.msra.mxu0 0
        %1278 = vmatprep.subr.bf16.mxu0 0
        %1279 = vmatpush1.bf16.xpose.msra.mxu0 0
        %1280 = vmatprep.subr.bf16.mxu0 0
        %1281 = vmatpush1.bf16.xpose.msra.mxu0 0
        %1282 = vmatprep.subr.bf16.mxu0 0
        %1283 = vmatpush1.bf16.xpose.msra.mxu0 0
        %1284 = vmatprep.subr.bf16.mxu0 0
        %1285 = vmatpush1.bf16.xpose.msra.mxu0 0
        %1286 = vmatprep.subr.bf16.mxu0 0
        %1287 = vmatpush1.bf16.xpose.msra.mxu0 %v1270
        %1288 = vmatprep.subr.bf16.mxu0 0
        %1289 = vmatpush2.bf16.xpose.msra.mxu0 0
        %1290 = vmatprep.subr.bf16.mxu0 0
        %1291 = vmatpush2.bf16.xpose.msra.mxu0 0
        %1292 = vmatprep.subr.bf16.mxu0 0
        %1293 = vmatpush2.bf16.xpose.msra.mxu0 0
        %1294 = vmatprep.subr.bf16.mxu0 0
        %1295 = vmatpush2.bf16.xpose.msra.mxu0 0
        %1296 = vmatprep.subr.bf16.mxu0 0
        %1297 = vmatpush2.bf16.xpose.msra.mxu0 0
        %1298 = vmatprep.subr.bf16.mxu0 0
        %1299 = vmatpush2.bf16.xpose.msra.mxu0 0
        %1300 = vmatprep.subr.bf16.mxu0 0
        %1301 = vmatpush2.bf16.xpose.msra.mxu0 0
        %1302 = vmatprep.subr.bf16.mxu0 0
        %1303 = vmatpush2.bf16.xpose.msra.mxu0 0
        %1304 = vmatprep.mubr.bf16.mxu0 0
        %1305 = vmatmul.mubr.bf16.gmra.mxu0 %v1267
        %v1306 = vpop.f32.mrf.mxu0
        %v1307 = vadd.f32 0.0, %v1306
        %v1308 = vpop.f32.mrf.mxu0
        %v1309 = vpop.f32.mrf.mxu0
        %v1310 = vpop.f32.mrf.mxu0
        %1311 = vdwg.mxu0
        %v1312 = vsel %vm795, %v1307, -inf
        %1313 = vmax.xlane.f32.xlu0 %v1312
        %v1314 = vpop.xlane.xlu0 %1313
        %v1315 = vsub.f32 %v1307, %v1314
        %v1316 = vmul.f32 %v1315, 1.442695
        %v1317 = vpow.pop %v1316
        %v1318 = vsel %vm795, %v1317, 0.0
        %1319 = vadd.xlane.f32.xlu0 %v1318
        %v1320 = vpop.xlane.xlu0 %1319
        %v1321 = vpack.c.bf16 %v1317, %v1317
        %1322 = vrot.lane.b32.xlu0 %v1263, 64
        %v1323 = vpop.permute.xlu0 %1322
        %v1325 = vsel %vm795, %v1321, 0
        %v1328 = vsel %vm857, %v1323, 0
        %1330 = vmatprep.subr.bf16.mxu0 0
        %1331 = vmatpush1.bf16.msra.mxu0 0
        %1332 = vmatprep.subr.bf16.mxu0 0
        %1333 = vmatpush1.bf16.msra.mxu0 0
        %1334 = vmatprep.subr.bf16.mxu0 0
        %1335 = vmatpush1.bf16.msra.mxu0 0
        %1336 = vmatprep.subr.bf16.mxu0 0
        %1337 = vmatpush1.bf16.msra.mxu0 0
        %1338 = vmatprep.subr.bf16.mxu0 0
        %1339 = vmatpush1.bf16.msra.mxu0 0
        %1340 = vmatprep.subr.bf16.mxu0 0
        %1341 = vmatpush1.bf16.msra.mxu0 0
        %1342 = vmatprep.subr.bf16.mxu0 0
        %1343 = vmatpush1.bf16.msra.mxu0 0
        %1344 = vmatprep.subr.bf16.mxu0 0
        %1345 = vmatpush1.bf16.msra.mxu0 %v1328
        %1346 = vmatprep.subr.bf16.mxu0 0
        %1347 = vmatpush2.bf16.msra.mxu0 0
        %1348 = vmatprep.subr.bf16.mxu0 0
        %1349 = vmatpush2.bf16.msra.mxu0 0
        %1350 = vmatprep.subr.bf16.mxu0 0
        %1351 = vmatpush2.bf16.msra.mxu0 0
        %1352 = vmatprep.subr.bf16.mxu0 0
        %1353 = vmatpush2.bf16.msra.mxu0 0
        %1354 = vmatprep.subr.bf16.mxu0 0
        %1355 = vmatpush2.bf16.msra.mxu0 0
        %1356 = vmatprep.subr.bf16.mxu0 0
        %1357 = vmatpush2.bf16.msra.mxu0 0
        %1358 = vmatprep.subr.bf16.mxu0 0
        %1359 = vmatpush2.bf16.msra.mxu0 0
        %1360 = vmatprep.subr.bf16.mxu0 0
        %1361 = vmatpush2.bf16.msra.mxu0 0
        %1362 = vmatprep.mubr.bf16.mxu0 0
        %1363 = vmatmul.mubr.bf16.gmra.mxu0 %v1325
        %v1364 = vpop.f32.mrf.mxu0
        %v1365 = vadd.f32 0.0, %v1364
        %v1366 = vpop.f32.mrf.mxu0
        %v1367 = vpop.f32.mrf.mxu0
        %v1368 = vpop.f32.mrf.mxu0
        %1369 = vdwg.mxu0
        %v1370 = vrcp.pop %v1320
        %v1371 = vmul.f32 %v1365, %v1370
        %v1372 = vpack.c.bf16 %v1371, %v1371
        %1373 = vst.msk [vmem:[#allocation3 + $0x4] sm:$0xf] %vm904, %v1372
        %1374 = vrot.lane.b32.xlu0 %v1263, 120
        %v1375 = vpop.permute.xlu0 %1374
        %1376 = vrot.lane.b32.xlu0 %v1263, 88
        %v1377 = vpop.permute.xlu0 %1376
        %v1379 = vsel %vm795, %v1375, 0
        %v1382 = vsel %vm795, %v1377, 0
        %1384 = vmatprep.subr.bf16.mxu0 0
        %1385 = vmatpush1.bf16.xpose.msra.mxu0 0
        %1386 = vmatprep.subr.bf16.mxu0 0
        %1387 = vmatpush1.bf16.xpose.msra.mxu0 0
        %1388 = vmatprep.subr.bf16.mxu0 0
        %1389 = vmatpush1.bf16.xpose.msra.mxu0 0
        %1390 = vmatprep.subr.bf16.mxu0 0
        %1391 = vmatpush1.bf16.xpose.msra.mxu0 0
        %1392 = vmatprep.subr.bf16.mxu0 0
        %1393 = vmatpush1.bf16.xpose.msra.mxu0 0
        %1394 = vmatprep.subr.bf16.mxu0 0
        %1395 = vmatpush1.bf16.xpose.msra.mxu0 0
        %1396 = vmatprep.subr.bf16.mxu0 0
        %1397 = vmatpush1.bf16.xpose.msra.mxu0 0
        %1398 = vmatprep.subr.bf16.mxu0 0
        %1399 = vmatpush1.bf16.xpose.msra.mxu0 %v1382
        %1400 = vmatprep.subr.bf16.mxu0 0
        %1401 = vmatpush2.bf16.xpose.msra.mxu0 0
        %1402 = vmatprep.subr.bf16.mxu0 0
        %1403 = vmatpush2.bf16.xpose.msra.mxu0 0
        %1404 = vmatprep.subr.bf16.mxu0 0
        %1405 = vmatpush2.bf16.xpose.msra.mxu0 0
        %1406 = vmatprep.subr.bf16.mxu0 0
        %1407 = vmatpush2.bf16.xpose.msra.mxu0 0
        %1408 = vmatprep.subr.bf16.mxu0 0
        %1409 = vmatpush2.bf16.xpose.msra.mxu0 0
        %1410 = vmatprep.subr.bf16.mxu0 0
        %1411 = vmatpush2.bf16.xpose.msra.mxu0 0
        %1412 = vmatprep.subr.bf16.mxu0 0
        %1413 = vmatpush2.bf16.xpose.msra.mxu0 0
        %1414 = vmatprep.subr.bf16.mxu0 0
        %1415 = vmatpush2.bf16.xpose.msra.mxu0 0
        %1416 = vmatprep.mubr.bf16.mxu0 0
        %1417 = vmatmul.mubr.bf16.gmra.mxu0 %v1379
        %v1418 = vpop.f32.mrf.mxu0
        %v1419 = vadd.f32 0.0, %v1418
        %v1420 = vpop.f32.mrf.mxu0
        %v1421 = vpop.f32.mrf.mxu0
        %v1422 = vpop.f32.mrf.mxu0
        %1423 = vdwg.mxu0
        %v1424 = vsel %vm795, %v1419, -inf
        %1425 = vmax.xlane.f32.xlu0 %v1424
        %v1426 = vpop.xlane.xlu0 %1425
        %v1427 = vsub.f32 %v1419, %v1426
        %v1428 = vmul.f32 %v1427, 1.442695
        %v1429 = vpow.pop %v1428
        %v1430 = vsel %vm795, %v1429, 0.0
        %1431 = vadd.xlane.f32.xlu0 %v1430
        %v1432 = vpop.xlane.xlu0 %1431
        %v1433 = vpack.c.bf16 %v1429, %v1429
        %1434 = vrot.lane.b32.xlu0 %v1263, 56
        %v1435 = vpop.permute.xlu0 %1434
        %v1437 = vsel %vm795, %v1433, 0
        %v1440 = vsel %vm857, %v1435, 0
        %1442 = vmatprep.subr.bf16.mxu0 0
        %1443 = vmatpush1.bf16.msra.mxu0 0
        %1444 = vmatprep.subr.bf16.mxu0 0
        %1445 = vmatpush1.bf16.msra.mxu0 0
        %1446 = vmatprep.subr.bf16.mxu0 0
        %1447 = vmatpush1.bf16.msra.mxu0 0
        %1448 = vmatprep.subr.bf16.mxu0 0
        %1449 = vmatpush1.bf16.msra.mxu0 0
        %1450 = vmatprep.subr.bf16.mxu0 0
        %1451 = vmatpush1.bf16.msra.mxu0 0
        %1452 = vmatprep.subr.bf16.mxu0 0
        %1453 = vmatpush1.bf16.msra.mxu0 0
        %1454 = vmatprep.subr.bf16.mxu0 0
        %1455 = vmatpush1.bf16.msra.mxu0 0
        %1456 = vmatprep.subr.bf16.mxu0 0
        %1457 = vmatpush1.bf16.msra.mxu0 %v1440
        %1458 = vmatprep.subr.bf16.mxu0 0
        %1459 = vmatpush2.bf16.msra.mxu0 0
        %1460 = vmatprep.subr.bf16.mxu0 0
        %1461 = vmatpush2.bf16.msra.mxu0 0
        %1462 = vmatprep.subr.bf16.mxu0 0
        %1463 = vmatpush2.bf16.msra.mxu0 0
        %1464 = vmatprep.subr.bf16.mxu0 0
        %1465 = vmatpush2.bf16.msra.mxu0 0
        %1466 = vmatprep.subr.bf16.mxu0 0
        %1467 = vmatpush2.bf16.msra.mxu0 0
        %1468 = vmatprep.subr.bf16.mxu0 0
        %1469 = vmatpush2.bf16.msra.mxu0 0
        %1470 = vmatprep.subr.bf16.mxu0 0
        %1471 = vmatpush2.bf16.msra.mxu0 0
        %1472 = vmatprep.subr.bf16.mxu0 0
        %1473 = vmatpush2.bf16.msra.mxu0 0
        %1474 = vmatprep.mubr.bf16.mxu0 0
        %1475 = vmatmul.mubr.bf16.gmra.mxu0 %v1437
        %v1476 = vpop.f32.mrf.mxu0
        %v1477 = vadd.f32 0.0, %v1476
        %v1478 = vpop.f32.mrf.mxu0
        %v1479 = vpop.f32.mrf.mxu0
        %v1480 = vpop.f32.mrf.mxu0
        %1481 = vdwg.mxu0
        %v1482 = vrcp.pop %v1432
        %v1483 = vmul.f32 %v1477, %v1482
        %v1484 = vpack.c.bf16 %v1483, %v1483
        %v1486 = vunpack.c.l.b16 %v1484
        %v1487 = vpack.c.b16 %v1486, %v1486
        %1488 = vrot.lane.b32.xlu0 %v1487, 8
        %v1489 = vpop.permute.xlu0 %1488
        %1491 = vst.msk [vmem:[#allocation3 + $0x4] sm:$0xf] %vm1023, %v1489
        %1492 = vrot.lane.b32.xlu0 %v1263, 112
        %v1493 = vpop.permute.xlu0 %1492
        %1494 = vrot.lane.b32.xlu0 %v1263, 80
        %v1495 = vpop.permute.xlu0 %1494
        %v1497 = vsel %vm795, %v1493, 0
        %v1500 = vsel %vm795, %v1495, 0
        %1502 = vmatprep.subr.bf16.mxu0 0
        %1503 = vmatpush1.bf16.xpose.msra.mxu0 0
        %1504 = vmatprep.subr.bf16.mxu0 0
        %1505 = vmatpush1.bf16.xpose.msra.mxu0 0
        %1506 = vmatprep.subr.bf16.mxu0 0
        %1507 = vmatpush1.bf16.xpose.msra.mxu0 0
        %1508 = vmatprep.subr.bf16.mxu0 0
        %1509 = vmatpush1.bf16.xpose.msra.mxu0 0
        %1510 = vmatprep.subr.bf16.mxu0 0
        %1511 = vmatpush1.bf16.xpose.msra.mxu0 0
        %1512 = vmatprep.subr.bf16.mxu0 0
        %1513 = vmatpush1.bf16.xpose.msra.mxu0 0
        %1514 = vmatprep.subr.bf16.mxu0 0
        %1515 = vmatpush1.bf16.xpose.msra.mxu0 0
        %1516 = vmatprep.subr.bf16.mxu0 0
        %1517 = vmatpush1.bf16.xpose.msra.mxu0 %v1500
        %1518 = vmatprep.subr.bf16.mxu0 0
        %1519 = vmatpush2.bf16.xpose.msra.mxu0 0
        %1520 = vmatprep.subr.bf16.mxu0 0
        %1521 = vmatpush2.bf16.xpose.msra.mxu0 0
        %1522 = vmatprep.subr.bf16.mxu0 0
        %1523 = vmatpush2.bf16.xpose.msra.mxu0 0
        %1524 = vmatprep.subr.bf16.mxu0 0
        %1525 = vmatpush2.bf16.xpose.msra.mxu0 0
        %1526 = vmatprep.subr.bf16.mxu0 0
        %1527 = vmatpush2.bf16.xpose.msra.mxu0 0
        %1528 = vmatprep.subr.bf16.mxu0 0
        %1529 = vmatpush2.bf16.xpose.msra.mxu0 0
        %1530 = vmatprep.subr.bf16.mxu0 0
        %1531 = vmatpush2.bf16.xpose.msra.mxu0 0
        %1532 = vmatprep.subr.bf16.mxu0 0
        %1533 = vmatpush2.bf16.xpose.msra.mxu0 0
        %1534 = vmatprep.mubr.bf16.mxu0 0
        %1535 = vmatmul.mubr.bf16.gmra.mxu0 %v1497
        %v1536 = vpop.f32.mrf.mxu0
        %v1537 = vadd.f32 0.0, %v1536
        %v1538 = vpop.f32.mrf.mxu0
        %v1539 = vpop.f32.mrf.mxu0
        %v1540 = vpop.f32.mrf.mxu0
        %1541 = vdwg.mxu0
        %v1542 = vsel %vm795, %v1537, -inf
        %1543 = vmax.xlane.f32.xlu0 %v1542
        %v1544 = vpop.xlane.xlu0 %1543
        %v1545 = vsub.f32 %v1537, %v1544
        %v1546 = vmul.f32 %v1545, 1.442695
        %v1547 = vpow.pop %v1546
        %v1548 = vsel %vm795, %v1547, 0.0
        %1549 = vadd.xlane.f32.xlu0 %v1548
        %v1550 = vpop.xlane.xlu0 %1549
        %v1551 = vpack.c.bf16 %v1547, %v1547
        %1552 = vrot.lane.b32.xlu0 %v1263, 48
        %v1553 = vpop.permute.xlu0 %1552
        %v1555 = vsel %vm795, %v1551, 0
        %v1558 = vsel %vm857, %v1553, 0
        %1560 = vmatprep.subr.bf16.mxu0 0
        %1561 = vmatpush1.bf16.msra.mxu0 0
        %1562 = vmatprep.subr.bf16.mxu0 0
        %1563 = vmatpush1.bf16.msra.mxu0 0
        %1564 = vmatprep.subr.bf16.mxu0 0
        %1565 = vmatpush1.bf16.msra.mxu0 0
        %1566 = vmatprep.subr.bf16.mxu0 0
        %1567 = vmatpush1.bf16.msra.mxu0 0
        %1568 = vmatprep.subr.bf16.mxu0 0
        %1569 = vmatpush1.bf16.msra.mxu0 0
        %1570 = vmatprep.subr.bf16.mxu0 0
        %1571 = vmatpush1.bf16.msra.mxu0 0
        %1572 = vmatprep.subr.bf16.mxu0 0
        %1573 = vmatpush1.bf16.msra.mxu0 0
        %1574 = vmatprep.subr.bf16.mxu0 0
        %1575 = vmatpush1.bf16.msra.mxu0 %v1558
        %1576 = vmatprep.subr.bf16.mxu0 0
        %1577 = vmatpush2.bf16.msra.mxu0 0
        %1578 = vmatprep.subr.bf16.mxu0 0
        %1579 = vmatpush2.bf16.msra.mxu0 0
        %1580 = vmatprep.subr.bf16.mxu0 0
        %1581 = vmatpush2.bf16.msra.mxu0 0
        %1582 = vmatprep.subr.bf16.mxu0 0
        %1583 = vmatpush2.bf16.msra.mxu0 0
        %1584 = vmatprep.subr.bf16.mxu0 0
        %1585 = vmatpush2.bf16.msra.mxu0 0
        %1586 = vmatprep.subr.bf16.mxu0 0
        %1587 = vmatpush2.bf16.msra.mxu0 0
        %1588 = vmatprep.subr.bf16.mxu0 0
        %1589 = vmatpush2.bf16.msra.mxu0 0
        %1590 = vmatprep.subr.bf16.mxu0 0
        %1591 = vmatpush2.bf16.msra.mxu0 0
        %1592 = vmatprep.mubr.bf16.mxu0 0
        %1593 = vmatmul.mubr.bf16.gmra.mxu0 %v1555
        %v1594 = vpop.f32.mrf.mxu0
        %v1595 = vadd.f32 0.0, %v1594
        %v1596 = vpop.f32.mrf.mxu0
        %v1597 = vpop.f32.mrf.mxu0
        %v1598 = vpop.f32.mrf.mxu0
        %1599 = vdwg.mxu0
        %v1600 = vrcp.pop %v1550
        %v1601 = vmul.f32 %v1595, %v1600
        %v1602 = vpack.c.bf16 %v1601, %v1601
        %v1604 = vunpack.c.l.b16 %v1602
        %v1605 = vpack.c.b16 %v1604, %v1604
        %1606 = vrot.lane.b32.xlu0 %v1605, 16
        %v1607 = vpop.permute.xlu0 %1606
        %1609 = vst.msk [vmem:[#allocation3 + $0x4] sm:$0xf] %vm1142, %v1607
        %1610 = vrot.lane.b32.xlu0 %v1263, 104
        %v1611 = vpop.permute.xlu0 %1610
        %1612 = vrot.lane.b32.xlu0 %v1263, 72
        %v1613 = vpop.permute.xlu0 %1612
        %v1615 = vsel %vm795, %v1611, 0
        %v1618 = vsel %vm795, %v1613, 0
        %1620 = vmatprep.subr.bf16.mxu0 0
        %1621 = vmatpush1.bf16.xpose.msra.mxu0 0
        %1622 = vmatprep.subr.bf16.mxu0 0
        %1623 = vmatpush1.bf16.xpose.msra.mxu0 0
        %1624 = vmatprep.subr.bf16.mxu0 0
        %1625 = vmatpush1.bf16.xpose.msra.mxu0 0
        %1626 = vmatprep.subr.bf16.mxu0 0
        %1627 = vmatpush1.bf16.xpose.msra.mxu0 0
        %1628 = vmatprep.subr.bf16.mxu0 0
        %1629 = vmatpush1.bf16.xpose.msra.mxu0 0
        %1630 = vmatprep.subr.bf16.mxu0 0
        %1631 = vmatpush1.bf16.xpose.msra.mxu0 0
        %1632 = vmatprep.subr.bf16.mxu0 0
        %1633 = vmatpush1.bf16.xpose.msra.mxu0 0
        %1634 = vmatprep.subr.bf16.mxu0 0
        %1635 = vmatpush1.bf16.xpose.msra.mxu0 %v1618
        %1636 = vmatprep.subr.bf16.mxu0 0
        %1637 = vmatpush2.bf16.xpose.msra.mxu0 0
        %1638 = vmatprep.subr.bf16.mxu0 0
        %1639 = vmatpush2.bf16.xpose.msra.mxu0 0
        %1640 = vmatprep.subr.bf16.mxu0 0
        %1641 = vmatpush2.bf16.xpose.msra.mxu0 0
        %1642 = vmatprep.subr.bf16.mxu0 0
        %1643 = vmatpush2.bf16.xpose.msra.mxu0 0
        %1644 = vmatprep.subr.bf16.mxu0 0
        %1645 = vmatpush2.bf16.xpose.msra.mxu0 0
        %1646 = vmatprep.subr.bf16.mxu0 0
        %1647 = vmatpush2.bf16.xpose.msra.mxu0 0
        %1648 = vmatprep.subr.bf16.mxu0 0
        %1649 = vmatpush2.bf16.xpose.msra.mxu0 0
        %1650 = vmatprep.subr.bf16.mxu0 0
        %1651 = vmatpush2.bf16.xpose.msra.mxu0 0
        %1652 = vmatprep.mubr.bf16.mxu0 0
        %1653 = vmatmul.mubr.bf16.gmra.mxu0 %v1615
        %v1654 = vpop.f32.mrf.mxu0
        %v1655 = vadd.f32 0.0, %v1654
        %v1656 = vpop.f32.mrf.mxu0
        %v1657 = vpop.f32.mrf.mxu0
        %v1658 = vpop.f32.mrf.mxu0
        %1659 = vdwg.mxu0
        %v1660 = vsel %vm795, %v1655, -inf
        %1661 = vmax.xlane.f32.xlu0 %v1660
        %v1662 = vpop.xlane.xlu0 %1661
        %v1663 = vsub.f32 %v1655, %v1662
        %v1664 = vmul.f32 %v1663, 1.442695
        %v1665 = vpow.pop %v1664
        %v1666 = vsel %vm795, %v1665, 0.0
        %1667 = vadd.xlane.f32.xlu0 %v1666
        %v1668 = vpop.xlane.xlu0 %1667
        %v1669 = vpack.c.bf16 %v1665, %v1665
        %1670 = vrot.lane.b32.xlu0 %v1263, 40
        %v1671 = vpop.permute.xlu0 %1670
        %v1673 = vsel %vm795, %v1669, 0
        %v1676 = vsel %vm857, %v1671, 0
        %1678 = vmatprep.subr.bf16.mxu0 0
        %1679 = vmatpush1.bf16.msra.mxu0 0
        %1680 = vmatprep.subr.bf16.mxu0 0
        %1681 = vmatpush1.bf16.msra.mxu0 0
        %1682 = vmatprep.subr.bf16.mxu0 0
        %1683 = vmatpush1.bf16.msra.mxu0 0
        %1684 = vmatprep.subr.bf16.mxu0 0
        %1685 = vmatpush1.bf16.msra.mxu0 0
        %1686 = vmatprep.subr.bf16.mxu0 0
        %1687 = vmatpush1.bf16.msra.mxu0 0
        %1688 = vmatprep.subr.bf16.mxu0 0
        %1689 = vmatpush1.bf16.msra.mxu0 0
        %1690 = vmatprep.subr.bf16.mxu0 0
        %1691 = vmatpush1.bf16.msra.mxu0 0
        %1692 = vmatprep.subr.bf16.mxu0 0
        %1693 = vmatpush1.bf16.msra.mxu0 %v1676
        %1694 = vmatprep.subr.bf16.mxu0 0
        %1695 = vmatpush2.bf16.msra.mxu0 0
        %1696 = vmatprep.subr.bf16.mxu0 0
        %1697 = vmatpush2.bf16.msra.mxu0 0
        %1698 = vmatprep.subr.bf16.mxu0 0
        %1699 = vmatpush2.bf16.msra.mxu0 0
        %1700 = vmatprep.subr.bf16.mxu0 0
        %1701 = vmatpush2.bf16.msra.mxu0 0
        %1702 = vmatprep.subr.bf16.mxu0 0
        %1703 = vmatpush2.bf16.msra.mxu0 0
        %1704 = vmatprep.subr.bf16.mxu0 0
        %1705 = vmatpush2.bf16.msra.mxu0 0
        %1706 = vmatprep.subr.bf16.mxu0 0
        %1707 = vmatpush2.bf16.msra.mxu0 0
        %1708 = vmatprep.subr.bf16.mxu0 0
        %1709 = vmatpush2.bf16.msra.mxu0 0
        %1710 = vmatprep.mubr.bf16.mxu0 0
        %1711 = vmatmul.mubr.bf16.gmra.mxu0 %v1673
        %v1712 = vpop.f32.mrf.mxu0
        %v1713 = vadd.f32 0.0, %v1712
        %v1714 = vpop.f32.mrf.mxu0
        %v1715 = vpop.f32.mrf.mxu0
        %v1716 = vpop.f32.mrf.mxu0
        %1717 = vdwg.mxu0
        %v1718 = vrcp.pop %v1668
        %v1719 = vmul.f32 %v1713, %v1718
        %v1720 = vpack.c.bf16 %v1719, %v1719
        %v1722 = vunpack.c.l.b16 %v1720
        %v1723 = vpack.c.b16 %v1722, %v1722
        %1724 = vrot.lane.b32.xlu0 %v1723, 24
        %v1725 = vpop.permute.xlu0 %1724
        %1727 = vst.msk [vmem:[#allocation3 + $0x4] sm:$0xf] %vm1261, %v1725
        %v1728 = vld [vmem:[#allocation3] sm:$0xf]
        %v1729 = vld [vmem:[#allocation3 + $0x4] sm:$0xf]
        %v1730 = vld [vmem:[%s646] sm:$0xf]
        %v1731 = vld [vmem:[%s646 + $0x4] sm:$0xf]
        %v1732 = vld [vmem:[%s646 + $0x8] sm:$0xf]
        %v1733 = vld [vmem:[%s646 + $0xc] sm:$0xf]
        %v1736 = vunpack.c.l.b16 %v1728
        %v1737 = vunpack.c.l.b16 %v1729
        %v1738 = vpack.c.b16 %v1737, %v1736
        %v1743 = vunpack.c.l.b16 %v1730
        %v1744 = vunpack.c.l.b16 %v1731
        %v1745 = vunpack.c.l.b16 %v1732
        %v1746 = vunpack.c.l.b16 %v1733
        %v1747 = vpack.c.b16 %v1744, %v1743
        %v1748 = vpack.c.b16 %v1746, %v1745
        %v1752 = vsel %vm686, %v1738, 0
        %1754 = vmatprep.subr.bf16.mxu0 0
        %1755 = vmatpush1.bf16.msra.mxu0 0
        %1756 = vmatprep.subr.bf16.mxu0 0
        %1757 = vmatpush1.bf16.msra.mxu0 0
        %1758 = vmatprep.subr.bf16.mxu0 0
        %1759 = vmatpush1.bf16.msra.mxu0 0
        %1760 = vmatprep.subr.bf16.mxu0 0
        %1761 = vmatpush1.bf16.msra.mxu0 0
        %1762 = vmatprep.subr.bf16.mxu0 0
        %1763 = vmatpush1.bf16.msra.mxu0 0
        %1764 = vmatprep.subr.bf16.mxu0 0
        %1765 = vmatpush1.bf16.msra.mxu0 0
        %1766 = vmatprep.subr.bf16.mxu0 0
        %1767 = vmatpush1.bf16.msra.mxu0 %v1748
        %1768 = vmatprep.subr.bf16.mxu0 0
        %1769 = vmatpush1.bf16.msra.mxu0 %v1747
        %1770 = vmatprep.subr.bf16.mxu0 0
        %1771 = vmatpush2.bf16.msra.mxu0 0
        %1772 = vmatprep.subr.bf16.mxu0 0
        %1773 = vmatpush2.bf16.msra.mxu0 0
        %1774 = vmatprep.subr.bf16.mxu0 0
        %1775 = vmatpush2.bf16.msra.mxu0 0
        %1776 = vmatprep.subr.bf16.mxu0 0
        %1777 = vmatpush2.bf16.msra.mxu0 0
        %1778 = vmatprep.subr.bf16.mxu0 0
        %1779 = vmatpush2.bf16.msra.mxu0 0
        %1780 = vmatprep.subr.bf16.mxu0 0
        %1781 = vmatpush2.bf16.msra.mxu0 0
        %1782 = vmatprep.subr.bf16.mxu0 0
        %1783 = vmatpush2.bf16.msra.mxu0 0
        %1784 = vmatprep.subr.bf16.mxu0 0
        %1785 = vmatpush2.bf16.msra.mxu0 0
        %1786 = vmatprep.mubr.bf16.mxu0 0
        %1787 = vmatmul.mubr.bf16.gmra.mxu0 %v1752
        %v1788 = vpop.f32.mrf.mxu0
        %v1789 = vadd.f32 0.0, %v1788
        %v1790 = vpop.f32.mrf.mxu0
        %v1791 = vpop.f32.mrf.mxu0
        %v1792 = vadd.f32 0.0, %v1791
        %v1793 = vpop.f32.mrf.mxu0
        %1794 = vdwg.mxu0
        %v1795 = vadd.f32 %v682, %v1789
        %v1796 = vadd.f32 %v683, %v1792
        %v1797 = vld [vmem:[%s649] sm:$0x1]
        %v1799 = vlaneseq
        %v1800 = vshrl.u32 %v1799, 7
        %v1801 = vsub.s32 0, %v1800
        %v1802 = vrot.slane %v1797, %v1801
        %v1804 = vadd.f32 %v1795, %v1802
        %v1805 = vadd.f32 %v1796, %v1802
        %v1806 = vld [vmem:[%s652] sm:$0x1]
        %v1807 = vld [vmem:[%s655] sm:$0x1]
        %v1808 = vsel %vm686, %v1804, 0.0
        %1809 = vadd.xlane.f32.xlu0 %v1808
        %v1810 = vpop.xlane.xlu0 %1809
        %v1811 = vsel %vm686, %v1805, 0.0
        %1812 = vadd.xlane.f32.xlu0 %v1811
        %v1813 = vpop.xlane.xlu0 %1812
        %v1814 = vmul.f32 %v1810, %v693
        %v1815 = vmul.f32 %v1813, %v693
        %v1816 = vsub.f32 %v1804, %v1814
        %v1817 = vsub.f32 %v1805, %v1815
        %v1818 = vmul.f32 %v1816, %v1816
        %v1819 = vmul.f32 %v1817, %v1817
        %v1820 = vsel %vm686, %v1818, 0.0
        %1821 = vadd.xlane.f32.xlu0 %v1820
        %v1822 = vpop.xlane.xlu0 %1821
        %v1823 = vsel %vm686, %v1819, 0.0
        %1824 = vadd.xlane.f32.xlu0 %v1823
        %v1825 = vpop.xlane.xlu0 %1824
        %v1826 = vmul.f32 %v1822, %v693
        %v1827 = vmul.f32 %v1825, %v693
        %v1828 = vadd.f32 %v1826, 1e-05
        %v1829 = vadd.f32 %v1827, 1e-05
        %v1830 = vrsqrt.pop %v1828
        %v1831 = vrsqrt.pop %v1829
        %v1832 = vmul.f32 %v1816, %v1830
        %v1833 = vmul.f32 %v1817, %v1831
        %v1835 = vlaneseq
        %v1836 = vshrl.u32 %v1835, 7
        %v1837 = vsub.s32 0, %v1836
        %v1838 = vrot.slane %v1806, %v1837
        %v1840 = vmul.f32 %v1832, %v1838
        %v1841 = vmul.f32 %v1833, %v1838
        %v1843 = vlaneseq
        %v1844 = vshrl.u32 %v1843, 7
        %v1845 = vsub.s32 0, %v1844
        %v1846 = vrot.slane %v1807, %v1845
        %v1848 = vadd.f32 %v1840, %v1846
        %v1849 = vadd.f32 %v1841, %v1846
        %v1850 = vpack.c.bf16 %v1849, %v1848
        %v1851 = vld [vmem:[%s660] sm:$0xf]
        %v1852 = vld [vmem:[%s660 + $0x4] sm:$0xf]
        %v1853 = vld [vmem:[%s660 + $0x8] sm:$0xf]
        %v1854 = vld [vmem:[%s660 + $0xc] sm:$0xf]
        %v1855 = vld [vmem:[%s663] sm:$0x1]
        %v1857 = vlaneseq
        %v1858 = vshrl.u32 %v1857, 7
        %v1859 = vsub.s32 0, %v1858
        %v1860 = vrot.slane %v1855, %v1859
        %v1866 = vunpack.c.l.b16 %v1851
        %v1867 = vunpack.c.l.b16 %v1852
        %v1868 = vunpack.c.l.b16 %v1853
        %v1869 = vunpack.c.l.b16 %v1854
        %v1870 = vpack.c.b16 %v1867, %v1866
        %v1871 = vpack.c.b16 %v1869, %v1868
        %v1875 = vsel %vm686, %v1850, 0
        %1877 = vmatprep.subr.bf16.mxu0 0
        %1878 = vmatpush1.bf16.msra.mxu0 0
        %1879 = vmatprep.subr.bf16.mxu0 0
        %1880 = vmatpush1.bf16.msra.mxu0 0
        %1881 = vmatprep.subr.bf16.mxu0 0
        %1882 = vmatpush1.bf16.msra.mxu0 0
        %1883 = vmatprep.subr.bf16.mxu0 0
        %1884 = vmatpush1.bf16.msra.mxu0 0
        %1885 = vmatprep.subr.bf16.mxu0 0
        %1886 = vmatpush1.bf16.msra.mxu0 0
        %1887 = vmatprep.subr.bf16.mxu0 0
        %1888 = vmatpush1.bf16.msra.mxu0 0
        %1889 = vmatprep.subr.bf16.mxu0 0
        %1890 = vmatpush1.bf16.msra.mxu0 %v1871
        %1891 = vmatprep.subr.bf16.mxu0 0
        %1892 = vmatpush1.bf16.msra.mxu0 %v1870
        %1893 = vmatprep.subr.bf16.mxu0 0
        %1894 = vmatpush2.bf16.msra.mxu0 0
        %1895 = vmatprep.subr.bf16.mxu0 0
        %1896 = vmatpush2.bf16.msra.mxu0 0
        %1897 = vmatprep.subr.bf16.mxu0 0
        %1898 = vmatpush2.bf16.msra.mxu0 0
        %1899 = vmatprep.subr.bf16.mxu0 0
        %1900 = vmatpush2.bf16.msra.mxu0 0
        %1901 = vmatprep.subr.bf16.mxu0 0
        %1902 = vmatpush2.bf16.msra.mxu0 0
        %1903 = vmatprep.subr.bf16.mxu0 0
        %1904 = vmatpush2.bf16.msra.mxu0 0
        %1905 = vmatprep.subr.bf16.mxu0 0
        %1906 = vmatpush2.bf16.msra.mxu0 0
        %1907 = vmatprep.subr.bf16.mxu0 0
        %1908 = vmatpush2.bf16.msra.mxu0 0
        %1909 = vmatprep.mubr.bf16.mxu0 0
        %1910 = vmatmul.mubr.bf16.gmra.mxu0 %v1875
        %v1911 = vpop.f32.mrf.mxu0
        %v1912 = vadd.f32 %v1860, %v1911
        %v1913 = vpop.f32.mrf.mxu0
        %v1914 = vpop.f32.mrf.mxu0
        %v1915 = vadd.f32 %v1860, %v1914
        %v1916 = vpop.f32.mrf.mxu0
        %1917 = vdwg.mxu0
        %v1918 = vmul.f32 %v1912, 0.5
        %v1919 = vmul.f32 %v1915, 0.5
        %v1920 = vmul.f32 %v1912, 0.70710677
        %v1921 = vmul.f32 %v1915, 0.70710677
        %v1922 = verf.f32.pop %v1920
        %v1923 = verf.f32.pop %v1921
        %v1924 = vadd.f32 %v1922, 1.0
        %v1925 = vadd.f32 %v1923, 1.0
        %v1926 = vmul.f32 %v1918, %v1924
        %v1927 = vmul.f32 %v1919, %v1925
        %v1928 = vpack.c.bf16 %v1927, %v1926
        %v1929 = vld [vmem:[%s668] sm:$0xf]
        %v1930 = vld [vmem:[%s668 + $0x4] sm:$0xf]
        %v1931 = vld [vmem:[%s668 + $0x8] sm:$0xf]
        %v1932 = vld [vmem:[%s668 + $0xc] sm:$0xf]
        %v1933 = vld [vmem:[%s668 + $0x10] sm:$0xf]
        %v1934 = vld [vmem:[%s668 + $0x14] sm:$0xf]
        %v1935 = vld [vmem:[%s668 + $0x18] sm:$0xf]
        %v1936 = vld [vmem:[%s668 + $0x1c] sm:$0xf]
        %v1937 = vld [vmem:[%s671] sm:$0x1]
        %v1939 = vlaneseq
        %v1940 = vshrl.u32 %v1939, 7
        %v1941 = vsub.s32 0, %v1940
        %v1942 = vrot.slane %v1937, %v1941
        %v1952 = vunpack.c.l.b16 %v1929
        %v1953 = vunpack.c.l.b16 %v1930
        %v1954 = vunpack.c.l.b16 %v1931
        %v1955 = vunpack.c.l.b16 %v1932
        %v1956 = vunpack.c.l.b16 %v1933
        %v1957 = vunpack.c.l.b16 %v1934
        %v1958 = vunpack.c.l.b16 %v1935
        %v1959 = vunpack.c.l.b16 %v1936
        %v1960 = vpack.c.b16 %v1953, %v1952
        %v1961 = vpack.c.b16 %v1955, %v1954
        %v1962 = vpack.c.b16 %v1957, %v1956
        %v1963 = vpack.c.b16 %v1959, %v1958
        %vm1968 = vcmask 523264
        %v1970 = vsel %vm1968, %v1928, 0
        %1972 = vmatprep.subr.bf16.mxu0 0
        %1973 = vmatpush1.bf16.msra.mxu0 0
        %1974 = vmatprep.subr.bf16.mxu0 0
        %1975 = vmatpush1.bf16.msra.mxu0 0
        %1976 = vmatprep.subr.bf16.mxu0 0
        %1977 = vmatpush1.bf16.msra.mxu0 0
        %1978 = vmatprep.subr.bf16.mxu0 0
        %1979 = vmatpush1.bf16.msra.mxu0 0
        %1980 = vmatprep.subr.bf16.mxu0 0
        %1981 = vmatpush1.bf16.msra.mxu0 %v1963
        %1982 = vmatprep.subr.bf16.mxu0 0
        %1983 = vmatpush1.bf16.msra.mxu0 %v1962
        %1984 = vmatprep.subr.bf16.mxu0 0
        %1985 = vmatpush1.bf16.msra.mxu0 %v1961
        %1986 = vmatprep.subr.bf16.mxu0 0
        %1987 = vmatpush1.bf16.msra.mxu0 %v1960
        %1988 = vmatprep.subr.bf16.mxu0 0
        %1989 = vmatpush2.bf16.msra.mxu0 0
        %1990 = vmatprep.subr.bf16.mxu0 0
        %1991 = vmatpush2.bf16.msra.mxu0 0
        %1992 = vmatprep.subr.bf16.mxu0 0
        %1993 = vmatpush2.bf16.msra.mxu0 0
        %1994 = vmatprep.subr.bf16.mxu0 0
        %1995 = vmatpush2.bf16.msra.mxu0 0
        %1996 = vmatprep.subr.bf16.mxu0 0
        %1997 = vmatpush2.bf16.msra.mxu0 0
        %1998 = vmatprep.subr.bf16.mxu0 0
        %1999 = vmatpush2.bf16.msra.mxu0 0
        %2000 = vmatprep.subr.bf16.mxu0 0
        %2001 = vmatpush2.bf16.msra.mxu0 0
        %2002 = vmatprep.subr.bf16.mxu0 0
        %2003 = vmatpush2.bf16.msra.mxu0 0
        %2004 = vmatprep.mubr.bf16.mxu0 0
        %2005 = vmatmul.mubr.bf16.gmra.mxu0 %v1970
        %v2006 = vpop.f32.mrf.mxu0
        %v2007 = vadd.f32 %v1942, %v2006
        %v2008 = vpop.f32.mrf.mxu0
        %v2009 = vpop.f32.mrf.mxu0
        %v2010 = vadd.f32 %v1942, %v2009
        %v2011 = vpop.f32.mrf.mxu0
        %2012 = vdwg.mxu0
        %v2013 = vadd.f32 %v1804, %v2007
        %v2014 = vadd.f32 %v1805, %v2010
        %2015 = vst.msk [vmem:[#allocation2] sm:$0xff] %vm686, %v2013
        %2016 = vst.msk [vmem:[#allocation2 + $0x8] sm:$0xff] %vm686, %v2014
        %p2017 = scmp.eq.s32.totalorder %s35, 1
        // Predicated region
        $region89: #{tpu_custom_call.1} parent=75 // pred_check
          %p2018 = pneg %p2017
        $region90: #{tpu_custom_call.1} parent=75 // pred_check_branch
          %2020 = sbr.rel (%p2018) target = $region92
        $region91: #{tpu_custom_call.1} parent=75 // pred_region
          %v2021 = vld [vmem:[%s12] sm:$0x1]
          %v2022 = vld [vmem:[%s13] sm:$0x1]
          %v2023 = vsel %vm686, %v2013, 0.0
          %2024 = vadd.xlane.f32.xlu0 %v2023
          %v2025 = vpop.xlane.xlu0 %2024
          %v2026 = vsel %vm686, %v2014, 0.0
          %2027 = vadd.xlane.f32.xlu0 %v2026
          %v2028 = vpop.xlane.xlu0 %2027
          %v2029 = vmul.f32 %v2025, %v693
          %v2030 = vmul.f32 %v2028, %v693
          %v2031 = vsub.f32 %v2013, %v2029
          %v2032 = vsub.f32 %v2014, %v2030
          %v2033 = vmul.f32 %v2031, %v2031
          %v2034 = vmul.f32 %v2032, %v2032
          %v2035 = vsel %vm686, %v2033, 0.0
          %2036 = vadd.xlane.f32.xlu0 %v2035
          %v2037 = vpop.xlane.xlu0 %2036
          %v2038 = vsel %vm686, %v2034, 0.0
          %2039 = vadd.xlane.f32.xlu0 %v2038
          %v2040 = vpop.xlane.xlu0 %2039
          %v2041 = vmul.f32 %v2037, %v693
          %v2042 = vmul.f32 %v2040, %v693
          %v2043 = vadd.f32 %v2041, 1e-05
          %v2044 = vadd.f32 %v2042, 1e-05
          %v2045 = vrsqrt.pop %v2043
          %v2046 = vrsqrt.pop %v2044
          %v2047 = vmul.f32 %v2031, %v2045
          %v2048 = vmul.f32 %v2032, %v2046
          %v2050 = vlaneseq
          %v2051 = vshrl.u32 %v2050, 7
          %v2052 = vsub.s32 0, %v2051
          %v2053 = vrot.slane %v2021, %v2052
          %v2055 = vmul.f32 %v2047, %v2053
          %v2056 = vmul.f32 %v2048, %v2053
          %v2058 = vlaneseq
          %v2059 = vshrl.u32 %v2058, 7
          %v2060 = vsub.s32 0, %v2059
          %v2061 = vrot.slane %v2022, %v2060
          %v2063 = vadd.f32 %v2055, %v2061
          %v2064 = vadd.f32 %v2056, %v2061
          %2065 = vst.msk [vmem:[#allocation9] sm:$0xff] %vm686, %v2063
          %2066 = vst.msk [vmem:[#allocation9 + $0x8] sm:$0xff] %vm686, %v2064
        $region92: #{tpu_custom_call.1} parent=75 // pred_fallthru
          _
        // Predicated region
        $region93: #{tpu_custom_call.1} parent=75 // pred_check
          %p2067 = pneg %p414
        $region94: #{tpu_custom_call.1} parent=75 // pred_check_branch
          %2069 = sbr.rel (%p2067) target = $region96
        $region95: #{tpu_custom_call.1} parent=75 // pred_region
          %s2071 = ssub.s32 256, 256
          %2072 = vsyncadd [#allocation6], %s2071
          %s2073 = smul.addr %s34, 2
          %s2074 = smul.addr %s2073, 128
          %s2075 = scalar_lea.hbm %s14, %s2074
          %s2076 = sshll.u32 [#allocation9], 4
          %s2077 = int_to_ptr.vmem [resolvable:$true] %s2076
          %2082 = dma.vmem_to_hbm [thread:$0]  %s2077, 256, %s2075, [#allocation6], 128, 128, 8
        $region96: #{tpu_custom_call.1} parent=75 // pred_fallthru
          _
        // Predicated region
        $region97: #{tpu_custom_call.1} parent=75 // pred_check
          %p2083 = pneg %p414
        $region98: #{tpu_custom_call.1} parent=75 // pred_check_branch
          %2085 = sbr.rel (%p2083) target = $region100
        $region99: #{tpu_custom_call.1} parent=75 // pred_region
          %2086 = dma.done [#allocation6], 256
        $region100: #{tpu_custom_call.1} parent=75 // pred_fallthru
          _
      $region76: #{tpu_custom_call.1} parent=5 // pred_fallthru
        _
      %p2087 = scmp.le.s32.totalorder 2, %s25
      // Predicated region
      $region101: #{tpu_custom_call.1} parent=5 // pred_check
        %p2088 = pneg %p2087
      $region102: #{tpu_custom_call.1} parent=5 // pred_check_branch
        %2090 = sbr.rel (%p2088) target = $region104
      $region103: #{tpu_custom_call.1} parent=5 // pred_region
        %s2091 = ssub.s32 %s25, 2
      $region104: #{tpu_custom_call.1} parent=5 // pred_fallthru
        _
    $region6: #{tpu_custom_call.1} parent=1 // loop_footer
      %s29 = sadd.s32 1, %s25
    $region7: #{tpu_custom_call.1} parent=1 // loop_footer_branch
      %24 = sbr.rel target = $region3
    $region8: #{tpu_custom_call.1} parent=1 // loop_exit
      _
    %2092 = vsyncpa [#allocation5], 1
    %s2093 = scalar_lea.sflag [#allocation5], 1
    %2094 = vsyncpa %s2093, 1
    %2095 = vsyncpa [#allocation8], 1
    %s2096 = scalar_lea.sflag [#allocation8], 1
    %2097 = vsyncpa %s2096, 1
    %2098 = vsyncpa [#allocation6], 1
    %s2099 = scalar_lea.sflag [#allocation6], 1
    %2100 = vsyncpa %s2099, 1

</llo_original>
